<compile_context>
chip_gen: v5e
topology: v5e:2x2
jax: 0.10.0
libtpu: 0.0.40
codegen_flags: <defaults>
</compile_context>

<pallas_src>
import functools

import jax
import jax.numpy as jnp
from jax.experimental import pallas as pl
from jax.experimental.pallas import tpu as pltpu


# ----------------------------------------------------------------------------
# Parameter construction (deterministic, synthetic; BN folded into conv)
# ----------------------------------------------------------------------------
def _folded_conv_bn_params(key, cin, cout):
    kw, kg, kb, km, kv = jax.random.split(key, 5)
    w = 0.2 * jax.random.normal(kw, (cin, cout), jnp.float32)         # conv 1x1, bias=False
    gamma = 1.0 + 0.1 * jax.random.normal(kg, (cout,), jnp.float32)   # BN weight
    beta = 0.1 * jax.random.normal(kb, (cout,), jnp.float32)          # BN bias
    mean = 0.1 * jax.random.normal(km, (cout,), jnp.float32)          # BN running_mean
    var = 1.0 + jnp.abs(jax.random.normal(kv, (cout,), jnp.float32))  # BN running_var
    eps = 1e-5
    scale = gamma / jnp.sqrt(var + eps)
    w_eff = w * scale[None, :]
    b_eff = beta - mean * scale
    return w_eff, b_eff


# ----------------------------------------------------------------------------
# VMEM-aware, generation-aware tiling plan
# ----------------------------------------------------------------------------
def _plan_tiling(B, M, branch_shapes, cagg, group_bytes, out_bytes):
    """Pick m_tile and an explicit vmem_limit_bytes for the current chip."""
    try:
        info = pltpu.get_tpu_info()
        vmem_cap = int(getattr(info, "vmem_capacity_bytes", 64 * 1024 * 1024))
    except Exception:
        vmem_cap = 64 * 1024 * 1024                      # conservative (v7x-sized)
    budget = int(vmem_cap * 0.55)
    sub_pack = max(1, 4 // group_bytes) * 8              # sublane packing of grouped dtype

    def est(mt):
        tot = 4 << 20                                    # slack: weights, relayout temps
        for K, cin_pad, couts in branch_shapes:
            k_rows = -(-K // sub_pack) * sub_pack
            tot += 2 * cin_pad * k_rows * mt * group_bytes   # double-buffered grouped block
            tot += cin_pad * K * mt * group_bytes            # concat'ed lane-dense input
            cmax = max(couts) if couts else cin_pad
            tot += 2 * cmax * K * mt * 4                     # live f32 activations (in+out)
        tot += 2 * cagg * mt * out_bytes                     # double-buffered output block
        return tot

    candidates = [t for t in (1024, 512, 256, 128) if M % t == 0]
    m_tile = None
    for t in candidates:
        if est(t) <= budget and B * (M // t) >= 2:           # keep >=2 steps for v7x 2 TCs
            m_tile = t
            break
    if m_tile is None:
        m_tile = candidates[-1] if candidates else M         # masked stores if M < 128
    vmem_limit = max(32 << 20, est(m_tile) + (8 << 20))
    vmem_limit = min(vmem_limit, max(16 << 20, int(vmem_cap * 0.9)))
    return m_tile, vmem_limit


# ----------------------------------------------------------------------------
# Fused Pallas kernel: per (batch, M-tile) block do, for each branch:
#   assemble lane-dense X = (Cin_pad, K*m_tile)  (columns k-major)
#   MLP chain  X <- relu(W^T X + b)   (bf16 MXU, f32 accumulation)
#   reduce over K via lane-aligned slices, @ agg_W_br^T
# then sum branch contributions (implicit concat), + agg bias, ReLU,
# store (Cagg, m_tile) directly (already lane-dense, no transpose).
# ----------------------------------------------------------------------------
def _fused_kernel(branch_meta, reduction, compute_dtype, *refs):
    nb = len(branch_meta)
    out_ref = refs[-1]
    agg_b = refs[-2][...]                                 # (Cagg, 1) f32
    pos = nb
    acc = None
    for br, (K, num_layers) in enumerate(branch_meta):
        g = refs[br]                                      # (1, Cin_pad, K, mt) compute_dtype
        mt = g.shape[-1]
        # Lane-dense channels-first activations; k-major columns keep the
        # K-reduction as static lane-aligned slices (no in-kernel relayout/reshape).
        x = jnp.concatenate([g[0, :, k, :] for k in range(K)], axis=-1)  # (Cin_pad, K*mt)
        for _ in range(num_layers):
            wt = refs[pos][...]                           # (cout, cin)  compute_dtype
            b = refs[pos + 1][...]                        # (cout, 1)    f32
            pos += 2
            x = jnp.dot(wt, x.astype(compute_dtype),
                        preferred_element_type=jnp.float32)
            x = jnp.maximum(x + b, 0.0)                   # bias / ReLU in f32 (VPU)
        # K-reduction: tree reduce over lane-aligned (cout, mt) slices.
        parts = [x[:, k * mt:(k + 1) * mt] for k in range(K)]
        while len(parts) > 1:
            nxt = []
            for i in range(0, len(parts) - 1, 2):
                if reduction == "max":
                    nxt.append(jnp.maximum(parts[i], parts[i + 1]))
                else:
                    nxt.append(parts[i] + parts[i + 1])
            if len(parts) % 2:
                nxt.append(parts[-1])
            parts = nxt
        red = parts[0]                                    # (cout, mt) f32
        if reduction == "mean":
            red = red * (1.0 / K)
        awt = refs[pos][...]                              # (Cagg, cout) compute_dtype
        pos += 1
        part = jnp.dot(awt, red.astype(compute_dtype),
                       preferred_element_type=jnp.float32)
        acc = part if acc is None else acc + part
    y = jnp.maximum(acc + agg_b, 0.0)                     # (Cagg, mt) f32
    out_ref[0] = y.astype(out_ref.dtype)                  # lane-dense store, no transpose


def fused_points_aggregation(grouped_list, branch_params, agg_w_splits, agg_b,
                             reduction, compute_dtype, out_dtype, m_tile,
                             vmem_limit_bytes, cost_estimate):
    B = grouped_list[0].shape[0]
    M = grouped_list[0].shape[-1]
    Cagg = agg_w_splits[0].shape[1]
    assert M % m_tile == 0

    in_specs, args, branch_meta = [], [], []
    for g in grouped_list:                                # (B, Cin_pad, K, M) compute_dtype
        _, cin_pad, K, _ = g.shape
        in_specs.append(pl.BlockSpec((1, cin_pad, K, m_tile),
                                     lambda bi, mi: (bi, 0, 0, mi)))
        args.append(g)
    for g, (ws, bs), aw in zip(grouped_list, branch_params, agg_w_splits):
        branch_meta.append((g.shape[2], len(ws)))
        for w, b in zip(ws, bs):
            wt = jnp.asarray(w).T.astype(compute_dtype)   # pre-transposed (cout, cin)
            in_specs.append(pl.BlockSpec(wt.shape, lambda bi, mi: (0, 0)))
            args.append(wt)
            in_specs.append(pl.BlockSpec((int(b.shape[0]), 1), lambda bi, mi: (0, 0)))
            args.append(b.reshape(-1, 1).astype(jnp.float32))
        awt = jnp.asarray(aw).T.astype(compute_dtype)     # (Cagg, cout_br)
        in_specs.append(pl.BlockSpec(awt.shape, lambda bi, mi: (0, 0)))
        args.append(awt)
    in_specs.append(pl.BlockSpec((Cagg, 1), lambda bi, mi: (0, 0)))
    args.append(agg_b.reshape(-1, 1).astype(jnp.float32))

    kernel = functools.partial(_fused_kernel, tuple(branch_meta), reduction,
                               compute_dtype)
    return pl.pallas_call(
        kernel,
        out_shape=jax.ShapeDtypeStruct((B, Cagg, M), out_dtype),
        grid=(B, M // m_tile),
        in_specs=in_specs,
        out_specs=pl.BlockSpec((1, Cagg, m_tile), lambda bi, mi: (bi, 0, mi)),
        compiler_params=pltpu.CompilerParams(
            dimension_semantics=("parallel", "parallel"),
            vmem_limit_bytes=int(vmem_limit_bytes)),
        cost_estimate=cost_estimate,
    )(*args)


# ----------------------------------------------------------------------------
# Module equivalent
# ----------------------------------------------------------------------------
class PointsAggregationPallas:
    def __init__(self, num_neighbors, radii, in_channels, mlps_channels,
                 aggregation_channels, reduction="max", use_xyz=True, seed=0,
                 compute_dtype=jnp.bfloat16, out_dtype=jnp.bfloat16):
        assert len(mlps_channels) == len(num_neighbors) == len(radii)
        assert reduction in ("max", "mean", "sum"), reduction
        self.num_neighbors = num_neighbors
        self.radii = radii
        self.use_xyz = use_xyz
        self.reduction = reduction
        self.compute_dtype = compute_dtype
        self.out_dtype = out_dtype

        cin = in_channels + (3 if use_xyz else 0)
        self.cin = cin
        self.cin_pad = -(-cin // 8) * 8       # pad Cin to multiple of 8 (exact: zero rows in W0)

        key = jax.random.PRNGKey(seed)
        self.branch_params = []
        for mlp_channels in mlps_channels:
            ws, bs = [], []
            c = cin
            for j, cout in enumerate(mlp_channels):
                key, sub = jax.random.split(key)
                w, b = _folded_conv_bn_params(sub, c, cout)
                if j == 0 and self.cin_pad != cin:
                    w = jnp.concatenate(
                        [w, jnp.zeros((self.cin_pad - cin, cout), jnp.float32)], axis=0)
                ws.append(w)
                bs.append(b)
                c = cout
            self.branch_params.append((ws, bs))

        csum = sum(m[-1] for m in mlps_channels)
        key, sub = jax.random.split(key)
        self.agg_w, self.agg_b = _folded_conv_bn_params(sub, csum, aggregation_channels)
        splits, off = [], 0
        for m in mlps_channels:
            splits.append(self.agg_w[off:off + m[-1]])
            off += m[-1]
        self.agg_w_splits = splits

    # ------------------------------------------------------------------
    # Ball query (sort-free first-K) — XLA glue.
    # TODO(synk): tile / fuse this (B,M,N) distance + scatter pass for large N.
    # ------------------------------------------------------------------
    def _ball_query(self, points, centroids, K, radius):
        B, N, _ = points.shape
        M = centroids.shape[1]
        pn2 = jnp.sum(points * points, axis=-1)                 # (B, N)
        cn2 = jnp.sum(centroids * centroids, axis=-1)           # (B, M)
        d2 = (cn2[:, :, None] + pn2[:, None, :]
              - 2.0 * jnp.einsum("bmd,bnd->bmn", centroids, points))
        mask = d2 < (radius * radius)
        rank = jnp.cumsum(mask.astype(jnp.int32), axis=-1) - 1
        slot = jnp.where(mask & (rank < K), rank, K)            # K = dump slot
        n_ids = jnp.broadcast_to(jnp.arange(N, dtype=jnp.int32), (B, M, N))
        init = jnp.full((B, M, K + 1), N, dtype=jnp.int32)      # N = "no hit" sentinel
        scat = jax.vmap(jax.vmap(lambda i0, s, v: i0.at[s].set(v)))(init, slot, n_ids)
        first_k = scat[..., :K]                                  # (B, M, K)
        first = first_k[..., :1]
        first = jnp.where(first >= N, 0, first)                  # no hit at all -> index 0
        idx = jnp.where(first_k >= N, first, first_k)            # pad with first hit
        return idx

    # Channels-first grouping for the kernel: (B, Cin_pad, K, M) in compute_dtype.
    # Gathers directly from features' native (B, C, N) layout.
    # TODO(synk): replace with in-kernel DMA gather via scalar-prefetched idx.
    def _group_cf(self, points_cf, features, centroids_cf, idx):
        B = idx.shape[0]
        K, M = idx.shape[2], idx.shape[1]
        idx_t = jnp.transpose(idx, (0, 2, 1))                    # (B, K, M)
        take = jax.vmap(lambda a, i: a[:, i])                    # (C,N),(K,M)->(C,K,M)
        gf = take(features, idx_t)                               # (B, C, K, M)
        if self.use_xyz:
            gx = take(points_cf, idx_t) - centroids_cf[:, :, None, :]   # (B, 3, K, M)
            parts = [gx, gf]
        else:
            parts = [gf]
        have = sum(p.shape[1] for p in parts)
        if self.cin_pad > have:
            parts.append(jnp.zeros((B, self.cin_pad - have, K, M), jnp.float32))
        return jnp.concatenate(parts, axis=1).astype(self.compute_dtype)

    def _cost_estimate(self, B, M):
        cagg = int(self.agg_w.shape[1])
        gbytes = jnp.dtype(self.compute_dtype).itemsize
        obytes = jnp.dtype(self.out_dtype).itemsize
        flops = 0
        byts = B * cagg * M * obytes
        for K, (ws, _), aw in zip(self.num_neighbors, self.branch_params,
                                  self.agg_w_splits):
            byts += B * self.cin_pad * K * M * gbytes
            for w in ws:
                flops += 2 * B * M * K * int(w.shape[0]) * int(w.shape[1])
                byts += int(w.size) * gbytes
            flops += 2 * B * M * int(aw.shape[0]) * int(aw.shape[1])
            byts += int(aw.size) * gbytes
        return pl.CostEstimate(flops=int(flops), transcendentals=0,
                               bytes_accessed=int(byts))

    def __call__(self, points, features, centroids):
        # points (B,N,3), features (B,C,N), centroids (B,M,3) -> (B, agg_channels, M)
        B, M = centroids.shape[0], centroids.shape[1]
        points_cf = jnp.transpose(points, (0, 2, 1))             # (B, 3, N)
        centroids_cf = jnp.transpose(centroids, (0, 2, 1))       # (B, 3, M)
        grouped_list = []
        for K, r in zip(self.num_neighbors, self.radii):
            idx = self._ball_query(points, centroids, K, r)
            grouped_list.append(self._group_cf(points_cf, features, centroids_cf, idx))

        branch_shapes = [(K, self.cin_pad, [int(w.shape[1]) for w in ws])
                         for K, (ws, _) in zip(self.num_neighbors, self.branch_params)]
        m_tile, vmem_limit = _plan_tiling(
            B, M, branch_shapes, int(self.agg_w.shape[1]),
            group_bytes=jnp.dtype(self.compute_dtype).itemsize,
            out_bytes=jnp.dtype(self.out_dtype).itemsize)
        cost = self._cost_estimate(B, M)
        return fused_points_aggregation(
            grouped_list, self.branch_params, self.agg_w_splits, self.agg_b,
            self.reduction, self.compute_dtype, self.out_dtype, m_tile,
            vmem_limit, cost)

    # pure-JAX f32 reference for correctness check (channels-last)
    def _group_ref(self, points, feats_cl, centroids, idx):
        B = idx.shape[0]
        M, K = idx.shape[1], idx.shape[2]
        gather = jax.vmap(lambda a, i: a[i])                     # (N,C),(M,K)->(M,K,C)
        gf = gather(feats_cl, idx)
        if self.use_xyz:
            gx = gather(points, idx) - centroids[:, :, None, :]
            parts = [gx, gf]
        else:
            parts = [gf]
        have = sum(p.shape[-1] for p in parts)
        if self.cin_pad > have:
            parts.append(jnp.zeros((B, M, K, self.cin_pad - have), jnp.float32))
        return jnp.concatenate(parts, axis=-1)                   # (B, M, K, Cin_pad)

    def reference(self, points, features, centroids):
        feats_cl = jnp.transpose(features, (0, 2, 1))
        outs = []
        for K, r, (ws, bs) in zip(self.num_neighbors, self.radii, self.branch_params):
            idx = self._ball_query(points, centroids, K, r)
            x = self._group_ref(points, feats_cl, centroids, idx)
            for w, b in zip(ws, bs):
                x = jnp.maximum(
                    jnp.einsum("bmkc,cd->bmkd", x, w, precision="highest") + b, 0.0)
            if self.reduction == "max":
                red = jnp.max(x, axis=2)
            elif self.reduction == "mean":
                red = jnp.mean(x, axis=2)
            else:
                red = jnp.sum(x, axis=2)
            outs.append(red)
        feats = jnp.concatenate(outs, axis=-1)
        y = jnp.maximum(
            jnp.einsum("bmc,cd->bmd", feats, self.agg_w, precision="highest")
            + self.agg_b, 0.0)
        return jnp.transpose(y, (0, 2, 1))


if __name__ == "__main__":
    B, N, M, C = 2, 16, 8, 4
    num_neighbors = (4, 8)
    radii = (0.3, 0.6)
    mlps_channels = ((8, 16), (8, 16))
    aggregation_channels = 32

    key = jax.random.PRNGKey(0)
    kp, kf = jax.random.split(key)
    points = jax.random.uniform(kp, (B, N, 3), jnp.float32)      # xyz in [0,1)^3
    features = jax.random.normal(kf, (B, C, N), jnp.float32)     # (B, C, N)
    centroids = points[:, :M, :]                                 # (B, M, 3)

    model = PointsAggregationPallas(
        num_neighbors, radii, in_channels=C, mlps_channels=mlps_channels,
        aggregation_channels=aggregation_channels, reduction="max",
        use_xyz=True, seed=0, compute_dtype=jnp.bfloat16, out_dtype=jnp.bfloat16)

    out = jax.block_until_ready(model(points, features, centroids))
    assert out.shape == (B, aggregation_channels, M), out.shape

    ref = jax.block_until_ready(model.reference(points, features, centroids))
    out_f32 = out.astype(jnp.float32)
    max_err = float(jnp.max(jnp.abs(out_f32 - ref)))
    # bf16 inputs / bf16 MXU matmuls (f32 accumulation) / bf16 output vs f32-highest ref
    assert bool(jnp.allclose(out_f32, ref, rtol=5e-2, atol=5e-2)), \
        f"mismatch vs reference (max err {max_err})"

    print("KERNEL_OK")
</pallas_src>

<mosaic_0001>
module attributes {stable_mosaic.version = 11 : i64} {
  func.func @_fused_kernel(%arg0: i32, %arg1: i32, %arg2: memref<1x8x4x8xbf16, #tpu.memory_space<vmem>>, %arg3: memref<1x8x8x8xbf16, #tpu.memory_space<vmem>>, %arg4: memref<8x8xbf16, #tpu.memory_space<vmem>>, %arg5: memref<8x1xf32, #tpu.memory_space<vmem>>, %arg6: memref<16x8xbf16, #tpu.memory_space<vmem>>, %arg7: memref<16x1xf32, #tpu.memory_space<vmem>>, %arg8: memref<32x16xbf16, #tpu.memory_space<vmem>>, %arg9: memref<8x8xbf16, #tpu.memory_space<vmem>>, %arg10: memref<8x1xf32, #tpu.memory_space<vmem>>, %arg11: memref<16x8xbf16, #tpu.memory_space<vmem>>, %arg12: memref<16x1xf32, #tpu.memory_space<vmem>>, %arg13: memref<32x16xbf16, #tpu.memory_space<vmem>>, %arg14: memref<32x1xf32, #tpu.memory_space<vmem>>, %arg15: memref<1x32x8xbf16, #tpu.memory_space<vmem>>) attributes {dimension_semantics = [#tpu.dimension_semantics<parallel>, #tpu.dimension_semantics<parallel>], iteration_bounds = array<i64: 2, 1>, scalar_prefetch = 0 : i64, scratch_operands = 0 : i64, tpu.core_type = #tpu.core_type<tc>, window_params = [{transform_indices = @transform_0, window_bounds = array<i64: 1, 8, 4, 8>}, {transform_indices = @transform_1, window_bounds = array<i64: 1, 8, 8, 8>}, {pipeline_mode = #tpu.pipeline_mode<synchronous>, transform_indices = @transform_2, window_bounds = array<i64: 8, 8>}, {pipeline_mode = #tpu.pipeline_mode<synchronous>, transform_indices = @transform_3, window_bounds = array<i64: 8, 1>}, {pipeline_mode = #tpu.pipeline_mode<synchronous>, transform_indices = @transform_4, window_bounds = array<i64: 16, 8>}, {pipeline_mode = #tpu.pipeline_mode<synchronous>, transform_indices = @transform_5, window_bounds = array<i64: 16, 1>}, {pipeline_mode = #tpu.pipeline_mode<synchronous>, transform_indices = @transform_6, window_bounds = array<i64: 32, 16>}, {pipeline_mode = #tpu.pipeline_mode<synchronous>, transform_indices = @transform_7, window_bounds = array<i64: 8, 8>}, {pipeline_mode = #tpu.pipeline_mode<synchronous>, transform_indices = @transform_8, window_bounds = array<i64: 8, 1>}, {pipeline_mode = #tpu.pipeline_mode<synchronous>, transform_indices = @transform_9, window_bounds = array<i64: 16, 8>}, {pipeline_mode = #tpu.pipeline_mode<synchronous>, transform_indices = @transform_10, window_bounds = array<i64: 16, 1>}, {pipeline_mode = #tpu.pipeline_mode<synchronous>, transform_indices = @transform_11, window_bounds = array<i64: 32, 16>}, {pipeline_mode = #tpu.pipeline_mode<synchronous>, transform_indices = @transform_12, window_bounds = array<i64: 32, 1>}, {transform_indices = @transform_13, window_bounds = array<i64: 1, 32, 8>}]} {
    %c0 = arith.constant 0 : index
    %c0_0 = arith.constant 0 : index
    %0 = vector.load %arg14[%c0, %c0_0] : memref<32x1xf32, #tpu.memory_space<vmem>>, vector<32x1xf32>
    %c0_1 = arith.constant 0 : index
    %c0_2 = arith.constant 0 : index
    %c0_3 = arith.constant 0 : index
    %c0_4 = arith.constant 0 : index
    %1 = vector.load %arg2[%c0_1, %c0_2, %c0_3, %c0_4] : memref<1x8x4x8xbf16, #tpu.memory_space<vmem>>, vector<1x8x1x8xbf16>
    %2 = vector.shape_cast %1 : vector<1x8x1x8xbf16> to vector<8x8xbf16>
    %c0_5 = arith.constant 0 : index
    %c0_6 = arith.constant 0 : index
    %c1 = arith.constant 1 : index
    %c0_7 = arith.constant 0 : index
    %3 = vector.load %arg2[%c0_5, %c0_6, %c1, %c0_7] : memref<1x8x4x8xbf16, #tpu.memory_space<vmem>>, vector<1x8x1x8xbf16>
    %4 = vector.shape_cast %3 : vector<1x8x1x8xbf16> to vector<8x8xbf16>
    %c0_8 = arith.constant 0 : index
    %c0_9 = arith.constant 0 : index
    %c2 = arith.constant 2 : index
    %c0_10 = arith.constant 0 : index
    %5 = vector.load %arg2[%c0_8, %c0_9, %c2, %c0_10] : memref<1x8x4x8xbf16, #tpu.memory_space<vmem>>, vector<1x8x1x8xbf16>
    %6 = vector.shape_cast %5 : vector<1x8x1x8xbf16> to vector<8x8xbf16>
    %c0_11 = arith.constant 0 : index
    %c0_12 = arith.constant 0 : index
    %c3 = arith.constant 3 : index
    %c0_13 = arith.constant 0 : index
    %7 = vector.load %arg2[%c0_11, %c0_12, %c3, %c0_13] : memref<1x8x4x8xbf16, #tpu.memory_space<vmem>>, vector<1x8x1x8xbf16>
    %8 = vector.shape_cast %7 : vector<1x8x1x8xbf16> to vector<8x8xbf16>
    %9 = tpu.concatenate %2, %4, %6, %8 in 1 : vector<8x8xbf16>, vector<8x8xbf16>, vector<8x8xbf16>, vector<8x8xbf16> -> vector<8x32xbf16>
    %c0_14 = arith.constant 0 : index
    %c0_15 = arith.constant 0 : index
    %10 = vector.load %arg4[%c0_14, %c0_15] : memref<8x8xbf16, #tpu.memory_space<vmem>>, vector<8x8xbf16>
    %c0_16 = arith.constant 0 : index
    %c0_17 = arith.constant 0 : index
    %11 = vector.load %arg5[%c0_16, %c0_17] : memref<8x1xf32, #tpu.memory_space<vmem>>, vector<8x1xf32>
    %cst = arith.constant dense<0.000000e+00> : vector<8x32xf32>
    %12 = tpu.matmul %10, %9, %cst {dimension_numbers = #tpu.dot_dimension_numbers<[1], [0], [0], [1], [0, 0, 1, 1], [], []>} : vector<8x8xbf16>, vector<8x32xbf16>, vector<8x32xf32> -> vector<8x32xf32>
    %13 = vector.broadcast %11 : vector<8x1xf32> to vector<8x32xf32>
    %14 = arith.addf %12, %13 : vector<8x32xf32>
    %cst_18 = arith.constant 0.000000e+00 : f32
    %15 = vector.broadcast %cst_18 : f32 to vector<8x32xf32>
    %16 = arith.maximumf %14, %15 : vector<8x32xf32>
    %c0_19 = arith.constant 0 : index
    %c0_20 = arith.constant 0 : index
    %17 = vector.load %arg6[%c0_19, %c0_20] : memref<16x8xbf16, #tpu.memory_space<vmem>>, vector<16x8xbf16>
    %c0_21 = arith.constant 0 : index
    %c0_22 = arith.constant 0 : index
    %18 = vector.load %arg7[%c0_21, %c0_22] : memref<16x1xf32, #tpu.memory_space<vmem>>, vector<16x1xf32>
    %19 = arith.truncf %16 : vector<8x32xf32> to vector<8x32xbf16>
    %cst_23 = arith.constant dense<0.000000e+00> : vector<16x32xf32>
    %20 = tpu.matmul %17, %19, %cst_23 {dimension_numbers = #tpu.dot_dimension_numbers<[1], [0], [0], [1], [0, 0, 1, 1], [], []>} : vector<16x8xbf16>, vector<8x32xbf16>, vector<16x32xf32> -> vector<16x32xf32>
    %21 = vector.broadcast %18 : vector<16x1xf32> to vector<16x32xf32>
    %22 = arith.addf %20, %21 : vector<16x32xf32>
    %cst_24 = arith.constant 0.000000e+00 : f32
    %23 = vector.broadcast %cst_24 : f32 to vector<16x32xf32>
    %24 = arith.maximumf %22, %23 : vector<16x32xf32>
    %25 = vector.extract_strided_slice %24 {offsets = [0, 0], sizes = [16, 8], strides = [1, 1]} : vector<16x32xf32> to vector<16x8xf32>
    %26 = vector.extract_strided_slice %24 {offsets = [0, 8], sizes = [16, 8], strides = [1, 1]} : vector<16x32xf32> to vector<16x8xf32>
    %27 = vector.extract_strided_slice %24 {offsets = [0, 16], sizes = [16, 8], strides = [1, 1]} : vector<16x32xf32> to vector<16x8xf32>
    %28 = vector.extract_strided_slice %24 {offsets = [0, 24], sizes = [16, 8], strides = [1, 1]} : vector<16x32xf32> to vector<16x8xf32>
    %29 = arith.maximumf %25, %26 : vector<16x8xf32>
    %30 = arith.maximumf %27, %28 : vector<16x8xf32>
    %31 = arith.maximumf %29, %30 : vector<16x8xf32>
    %c0_25 = arith.constant 0 : index
    %c0_26 = arith.constant 0 : index
    %32 = vector.load %arg8[%c0_25, %c0_26] : memref<32x16xbf16, #tpu.memory_space<vmem>>, vector<32x16xbf16>
    %33 = arith.truncf %31 : vector<16x8xf32> to vector<16x8xbf16>
    %cst_27 = arith.constant dense<0.000000e+00> : vector<32x8xf32>
    %34 = tpu.matmul %32, %33, %cst_27 {dimension_numbers = #tpu.dot_dimension_numbers<[1], [0], [0], [1], [0, 0, 1, 1], [], []>} : vector<32x16xbf16>, vector<16x8xbf16>, vector<32x8xf32> -> vector<32x8xf32>
    %c0_28 = arith.constant 0 : index
    %c0_29 = arith.constant 0 : index
    %c0_30 = arith.constant 0 : index
    %c0_31 = arith.constant 0 : index
    %35 = vector.load %arg3[%c0_28, %c0_29, %c0_30, %c0_31] : memref<1x8x8x8xbf16, #tpu.memory_space<vmem>>, vector<1x8x1x8xbf16>
    %36 = vector.shape_cast %35 : vector<1x8x1x8xbf16> to vector<8x8xbf16>
    %c0_32 = arith.constant 0 : index
    %c0_33 = arith.constant 0 : index
    %c1_34 = arith.constant 1 : index
    %c0_35 = arith.constant 0 : index
    %37 = vector.load %arg3[%c0_32, %c0_33, %c1_34, %c0_35] : memref<1x8x8x8xbf16, #tpu.memory_space<vmem>>, vector<1x8x1x8xbf16>
    %38 = vector.shape_cast %37 : vector<1x8x1x8xbf16> to vector<8x8xbf16>
    %c0_36 = arith.constant 0 : index
    %c0_37 = arith.constant 0 : index
    %c2_38 = arith.constant 2 : index
    %c0_39 = arith.constant 0 : index
    %39 = vector.load %arg3[%c0_36, %c0_37, %c2_38, %c0_39] : memref<1x8x8x8xbf16, #tpu.memory_space<vmem>>, vector<1x8x1x8xbf16>
    %40 = vector.shape_cast %39 : vector<1x8x1x8xbf16> to vector<8x8xbf16>
    %c0_40 = arith.constant 0 : index
    %c0_41 = arith.constant 0 : index
    %c3_42 = arith.constant 3 : index
    %c0_43 = arith.constant 0 : index
    %41 = vector.load %arg3[%c0_40, %c0_41, %c3_42, %c0_43] : memref<1x8x8x8xbf16, #tpu.memory_space<vmem>>, vector<1x8x1x8xbf16>
    %42 = vector.shape_cast %41 : vector<1x8x1x8xbf16> to vector<8x8xbf16>
    %c0_44 = arith.constant 0 : index
    %c0_45 = arith.constant 0 : index
    %c4 = arith.constant 4 : index
    %c0_46 = arith.constant 0 : index
    %43 = vector.load %arg3[%c0_44, %c0_45, %c4, %c0_46] : memref<1x8x8x8xbf16, #tpu.memory_space<vmem>>, vector<1x8x1x8xbf16>
    %44 = vector.shape_cast %43 : vector<1x8x1x8xbf16> to vector<8x8xbf16>
    %c0_47 = arith.constant 0 : index
    %c0_48 = arith.constant 0 : index
    %c5 = arith.constant 5 : index
    %c0_49 = arith.constant 0 : index
    %45 = vector.load %arg3[%c0_47, %c0_48, %c5, %c0_49] : memref<1x8x8x8xbf16, #tpu.memory_space<vmem>>, vector<1x8x1x8xbf16>
    %46 = vector.shape_cast %45 : vector<1x8x1x8xbf16> to vector<8x8xbf16>
    %c0_50 = arith.constant 0 : index
    %c0_51 = arith.constant 0 : index
    %c6 = arith.constant 6 : index
    %c0_52 = arith.constant 0 : index
    %47 = vector.load %arg3[%c0_50, %c0_51, %c6, %c0_52] : memref<1x8x8x8xbf16, #tpu.memory_space<vmem>>, vector<1x8x1x8xbf16>
    %48 = vector.shape_cast %47 : vector<1x8x1x8xbf16> to vector<8x8xbf16>
    %c0_53 = arith.constant 0 : index
    %c0_54 = arith.constant 0 : index
    %c7 = arith.constant 7 : index
    %c0_55 = arith.constant 0 : index
    %49 = vector.load %arg3[%c0_53, %c0_54, %c7, %c0_55] : memref<1x8x8x8xbf16, #tpu.memory_space<vmem>>, vector<1x8x1x8xbf16>
    %50 = vector.shape_cast %49 : vector<1x8x1x8xbf16> to vector<8x8xbf16>
    %51 = tpu.concatenate %36, %38, %40, %42, %44, %46, %48, %50 in 1 : vector<8x8xbf16>, vector<8x8xbf16>, vector<8x8xbf16>, vector<8x8xbf16>, vector<8x8xbf16>, vector<8x8xbf16>, vector<8x8xbf16>, vector<8x8xbf16> -> vector<8x64xbf16>
    %c0_56 = arith.constant 0 : index
    %c0_57 = arith.constant 0 : index
    %52 = vector.load %arg9[%c0_56, %c0_57] : memref<8x8xbf16, #tpu.memory_space<vmem>>, vector<8x8xbf16>
    %c0_58 = arith.constant 0 : index
    %c0_59 = arith.constant 0 : index
    %53 = vector.load %arg10[%c0_58, %c0_59] : memref<8x1xf32, #tpu.memory_space<vmem>>, vector<8x1xf32>
    %cst_60 = arith.constant dense<0.000000e+00> : vector<8x64xf32>
    %54 = tpu.matmul %52, %51, %cst_60 {dimension_numbers = #tpu.dot_dimension_numbers<[1], [0], [0], [1], [0, 0, 1, 1], [], []>} : vector<8x8xbf16>, vector<8x64xbf16>, vector<8x64xf32> -> vector<8x64xf32>
    %55 = vector.broadcast %53 : vector<8x1xf32> to vector<8x64xf32>
    %56 = arith.addf %54, %55 : vector<8x64xf32>
    %cst_61 = arith.constant 0.000000e+00 : f32
    %57 = vector.broadcast %cst_61 : f32 to vector<8x64xf32>
    %58 = arith.maximumf %56, %57 : vector<8x64xf32>
    %c0_62 = arith.constant 0 : index
    %c0_63 = arith.constant 0 : index
    %59 = vector.load %arg11[%c0_62, %c0_63] : memref<16x8xbf16, #tpu.memory_space<vmem>>, vector<16x8xbf16>
    %c0_64 = arith.constant 0 : index
    %c0_65 = arith.constant 0 : index
    %60 = vector.load %arg12[%c0_64, %c0_65] : memref<16x1xf32, #tpu.memory_space<vmem>>, vector<16x1xf32>
    %61 = arith.truncf %58 : vector<8x64xf32> to vector<8x64xbf16>
    %cst_66 = arith.constant dense<0.000000e+00> : vector<16x64xf32>
    %62 = tpu.matmul %59, %61, %cst_66 {dimension_numbers = #tpu.dot_dimension_numbers<[1], [0], [0], [1], [0, 0, 1, 1], [], []>} : vector<16x8xbf16>, vector<8x64xbf16>, vector<16x64xf32> -> vector<16x64xf32>
    %63 = vector.broadcast %60 : vector<16x1xf32> to vector<16x64xf32>
    %64 = arith.addf %62, %63 : vector<16x64xf32>
    %cst_67 = arith.constant 0.000000e+00 : f32
    %65 = vector.broadcast %cst_67 : f32 to vector<16x64xf32>
    %66 = arith.maximumf %64, %65 : vector<16x64xf32>
    %67 = vector.extract_strided_slice %66 {offsets = [0, 0], sizes = [16, 8], strides = [1, 1]} : vector<16x64xf32> to vector<16x8xf32>
    %68 = vector.extract_strided_slice %66 {offsets = [0, 8], sizes = [16, 8], strides = [1, 1]} : vector<16x64xf32> to vector<16x8xf32>
    %69 = vector.extract_strided_slice %66 {offsets = [0, 16], sizes = [16, 8], strides = [1, 1]} : vector<16x64xf32> to vector<16x8xf32>
    %70 = vector.extract_strided_slice %66 {offsets = [0, 24], sizes = [16, 8], strides = [1, 1]} : vector<16x64xf32> to vector<16x8xf32>
    %71 = vector.extract_strided_slice %66 {offsets = [0, 32], sizes = [16, 8], strides = [1, 1]} : vector<16x64xf32> to vector<16x8xf32>
    %72 = vector.extract_strided_slice %66 {offsets = [0, 40], sizes = [16, 8], strides = [1, 1]} : vector<16x64xf32> to vector<16x8xf32>
    %73 = vector.extract_strided_slice %66 {offsets = [0, 48], sizes = [16, 8], strides = [1, 1]} : vector<16x64xf32> to vector<16x8xf32>
    %74 = vector.extract_strided_slice %66 {offsets = [0, 56], sizes = [16, 8], strides = [1, 1]} : vector<16x64xf32> to vector<16x8xf32>
    %75 = arith.maximumf %67, %68 : vector<16x8xf32>
    %76 = arith.maximumf %69, %70 : vector<16x8xf32>
    %77 = arith.maximumf %71, %72 : vector<16x8xf32>
    %78 = arith.maximumf %73, %74 : vector<16x8xf32>
    %79 = arith.maximumf %75, %76 : vector<16x8xf32>
    %80 = arith.maximumf %77, %78 : vector<16x8xf32>
    %81 = arith.maximumf %79, %80 : vector<16x8xf32>
    %c0_68 = arith.constant 0 : index
    %c0_69 = arith.constant 0 : index
    %82 = vector.load %arg13[%c0_68, %c0_69] : memref<32x16xbf16, #tpu.memory_space<vmem>>, vector<32x16xbf16>
    %83 = arith.truncf %81 : vector<16x8xf32> to vector<16x8xbf16>
    %cst_70 = arith.constant dense<0.000000e+00> : vector<32x8xf32>
    %84 = tpu.matmul %82, %83, %cst_70 {dimension_numbers = #tpu.dot_dimension_numbers<[1], [0], [0], [1], [0, 0, 1, 1], [], []>} : vector<32x16xbf16>, vector<16x8xbf16>, vector<32x8xf32> -> vector<32x8xf32>
    %85 = arith.addf %34, %84 : vector<32x8xf32>
    %86 = vector.broadcast %0 : vector<32x1xf32> to vector<32x8xf32>
    %87 = arith.addf %85, %86 : vector<32x8xf32>
    %cst_71 = arith.constant 0.000000e+00 : f32
    %88 = vector.broadcast %cst_71 : f32 to vector<32x8xf32>
    %89 = arith.maximumf %87, %88 : vector<32x8xf32>
    %90 = arith.truncf %89 : vector<32x8xf32> to vector<32x8xbf16>
    %c0_72 = arith.constant 0 : index
    %c0_73 = arith.constant 0 : index
    %c0_74 = arith.constant 0 : index
    %91 = vector.load %arg15[%c0_72, %c0_73, %c0_74] : memref<1x32x8xbf16, #tpu.memory_space<vmem>>, vector<1x32x8xbf16>
    %92 = vector.shape_cast %91 : vector<1x32x8xbf16> to vector<32x8xbf16>
    %93 = vector.shape_cast %90 : vector<32x8xbf16> to vector<1x32x8xbf16>
    tpu.vector_store %arg15[%c0_72, %c0_73, %c0_74], %93 {strides = array<i32>} : memref<1x32x8xbf16, #tpu.memory_space<vmem>>, vector<1x32x8xbf16>,
    return
  }
  func.func @transform_0(%arg0: i32, %arg1: i32) -> (i32, i32, i32, i32) {
    %c0_i32 = arith.constant 0 : i32
    %c0_i32_0 = arith.constant 0 : i32
    %c0_i32_1 = arith.constant 0 : i32
    return %arg0, %c0_i32, %c0_i32_0, %arg1 : i32, i32, i32, i32
  }
  func.func @transform_1(%arg0: i32, %arg1: i32) -> (i32, i32, i32, i32) {
    %c0_i32 = arith.constant 0 : i32
    %c0_i32_0 = arith.constant 0 : i32
    %c0_i32_1 = arith.constant 0 : i32
    return %arg0, %c0_i32, %c0_i32_0, %arg1 : i32, i32, i32, i32
  }
  func.func @transform_2(%arg0: i32, %arg1: i32) -> (i32, i32) {
    %c0_i32 = arith.constant 0 : i32
    %c0_i32_0 = arith.constant 0 : i32
    %c0_i32_1 = arith.constant 0 : i32
    return %c0_i32, %c0_i32_0 : i32, i32
  }
  func.func @transform_3(%arg0: i32, %arg1: i32) -> (i32, i32) {
    %c0_i32 = arith.constant 0 : i32
    %c0_i32_0 = arith.constant 0 : i32
    %c0_i32_1 = arith.constant 0 : i32
    return %c0_i32, %c0_i32_0 : i32, i32
  }
  func.func @transform_4(%arg0: i32, %arg1: i32) -> (i32, i32) {
    %c0_i32 = arith.constant 0 : i32
    %c0_i32_0 = arith.constant 0 : i32
    %c0_i32_1 = arith.constant 0 : i32
    return %c0_i32, %c0_i32_0 : i32, i32
  }
  func.func @transform_5(%arg0: i32, %arg1: i32) -> (i32, i32) {
    %c0_i32 = arith.constant 0 : i32
    %c0_i32_0 = arith.constant 0 : i32
    %c0_i32_1 = arith.constant 0 : i32
    return %c0_i32, %c0_i32_0 : i32, i32
  }
  func.func @transform_6(%arg0: i32, %arg1: i32) -> (i32, i32) {
    %c0_i32 = arith.constant 0 : i32
    %c0_i32_0 = arith.constant 0 : i32
    %c0_i32_1 = arith.constant 0 : i32
    return %c0_i32, %c0_i32_0 : i32, i32
  }
  func.func @transform_7(%arg0: i32, %arg1: i32) -> (i32, i32) {
    %c0_i32 = arith.constant 0 : i32
    %c0_i32_0 = arith.constant 0 : i32
    %c0_i32_1 = arith.constant 0 : i32
    return %c0_i32, %c0_i32_0 : i32, i32
  }
  func.func @transform_8(%arg0: i32, %arg1: i32) -> (i32, i32) {
    %c0_i32 = arith.constant 0 : i32
    %c0_i32_0 = arith.constant 0 : i32
    %c0_i32_1 = arith.constant 0 : i32
    return %c0_i32, %c0_i32_0 : i32, i32
  }
  func.func @transform_9(%arg0: i32, %arg1: i32) -> (i32, i32) {
    %c0_i32 = arith.constant 0 : i32
    %c0_i32_0 = arith.constant 0 : i32
    %c0_i32_1 = arith.constant 0 : i32
    return %c0_i32, %c0_i32_0 : i32, i32
  }
  func.func @transform_10(%arg0: i32, %arg1: i32) -> (i32, i32) {
    %c0_i32 = arith.constant 0 : i32
    %c0_i32_0 = arith.constant 0 : i32
    %c0_i32_1 = arith.constant 0 : i32
    return %c0_i32, %c0_i32_0 : i32, i32
  }
  func.func @transform_11(%arg0: i32, %arg1: i32) -> (i32, i32) {
    %c0_i32 = arith.constant 0 : i32
    %c0_i32_0 = arith.constant 0 : i32
    %c0_i32_1 = arith.constant 0 : i32
    return %c0_i32, %c0_i32_0 : i32, i32
  }
  func.func @transform_12(%arg0: i32, %arg1: i32) -> (i32, i32) {
    %c0_i32 = arith.constant 0 : i32
    %c0_i32_0 = arith.constant 0 : i32
    %c0_i32_1 = arith.constant 0 : i32
    return %c0_i32, %c0_i32_0 : i32, i32
  }
  func.func @transform_13(%arg0: i32, %arg1: i32) -> (i32, i32, i32) {
    %c0_i32 = arith.constant 0 : i32
    %c0_i32_0 = arith.constant 0 : i32
    return %arg0, %c0_i32, %arg1 : i32, i32, i32
  }
}

</mosaic_0001>

<llo_original>
// kernel: tpu_custom_call.1
$region0: #{tpu_custom_call.1}
  #allocation0 [shape = 'u32[]', space=smem, size = 0x4, offset = 0x4, fixed_abs, tag = 'smem constant byte address 0x4 - core index']
  #allocation1 [shape = 'u32[72,128]{1,0:T(1,128)}', space=vmem, size = 0x9000, scoped, tag = 'internal scratch']
  %s0 = inlined_call_operand.vmem [shape: bf16[2,8,4,8], index: 0, kind: input, shape index: {}]
  %s1 = inlined_call_operand.vmem [shape: bf16[2,8,8,8], index: 1, kind: input, shape index: {}]
  %s2 = inlined_call_operand.vmem [shape: bf16[8,8], index: 2, kind: input, shape index: {}]
  %s3 = inlined_call_operand.vmem [shape: f32[8,1], index: 3, kind: input, shape index: {}]
  %s4 = inlined_call_operand.vmem [shape: bf16[16,8], index: 4, kind: input, shape index: {}]
  %s5 = inlined_call_operand.vmem [shape: f32[16,1], index: 5, kind: input, shape index: {}]
  %s6 = inlined_call_operand.vmem [shape: bf16[32,16], index: 6, kind: input, shape index: {}]
  %s7 = inlined_call_operand.vmem [shape: bf16[8,8], index: 7, kind: input, shape index: {}]
  %s8 = inlined_call_operand.vmem [shape: f32[8,1], index: 8, kind: input, shape index: {}]
  %s9 = inlined_call_operand.vmem [shape: bf16[16,8], index: 9, kind: input, shape index: {}]
  %s10 = inlined_call_operand.vmem [shape: f32[16,1], index: 10, kind: input, shape index: {}]
  %s11 = inlined_call_operand.vmem [shape: bf16[32,16], index: 11, kind: input, shape index: {}]
  %s12 = inlined_call_operand.vmem [shape: f32[32,1], index: 12, kind: input, shape index: {}]
  %s13 = inlined_call_operand.vmem [shape: bf16[2,32,8], index: 13, kind: output, shape index: {}]
  %s14 = sld [smem:[#allocation0]]
  $region85: #{tpu_custom_call.1} parent=0
    _
  %s16 = ssub.s32 1, %s14
  %s17 = scalar_select 0, %s16, %s14
  loop: start=0, step=1, limit=4
  $region2: #{tpu_custom_call.1} parent=0 // loop_pre_header
    _
  $region3: #{tpu_custom_call.1} parent=0 // loop_header
    %s19 = sphi 0, %s23
    %p20 = scmp.ge.s32.totalorder %s19, 4
    %s26 = sphi 0, %s38
    %s27 = sphi 0, %s34
    %s28 = sphi 0, %s26
    %s29 = sphi 0, %s27
    %s30 = sphi 0, %s28
    %s31 = sphi 0, %s29
    %s43 = sphi 0, %s45
    %s46 = sphi 0, %s43
    %s47 = sphi 0, %s46
    %s63 = sphi 0, %s47
    %s71 = sphi 0, %s73
    %s74 = sphi 0, %s71
    %s75 = sphi 0, %s74
    %s91 = sphi 0, %s75
    %s95 = sphi 0, %s95
    %s97 = sphi 0, %s95
    %s98 = sphi 0, %s97
    %s112 = sphi 0, %s98
    %s116 = sphi 0, %s116
    %s118 = sphi 0, %s116
    %s119 = sphi 0, %s118
    %s133 = sphi 0, %s119
    %s137 = sphi 0, %s137
    %s139 = sphi 0, %s137
    %s140 = sphi 0, %s139
    %s154 = sphi 0, %s140
    %s158 = sphi 0, %s158
    %s160 = sphi 0, %s158
    %s161 = sphi 0, %s160
    %s175 = sphi 0, %s161
    %s179 = sphi 0, %s179
    %s181 = sphi 0, %s179
    %s182 = sphi 0, %s181
    %s196 = sphi 0, %s182
    %s200 = sphi 0, %s200
    %s202 = sphi 0, %s200
    %s203 = sphi 0, %s202
    %s217 = sphi 0, %s203
    %s221 = sphi 0, %s221
    %s223 = sphi 0, %s221
    %s224 = sphi 0, %s223
    %s238 = sphi 0, %s224
    %s242 = sphi 0, %s242
    %s244 = sphi 0, %s242
    %s245 = sphi 0, %s244
    %s259 = sphi 0, %s245
    %s263 = sphi 0, %s263
    %s265 = sphi 0, %s263
    %s266 = sphi 0, %s265
    %s280 = sphi 0, %s266
    %s284 = sphi 0, %s284
    %s286 = sphi 0, %s284
    %s287 = sphi 0, %s286
    %s301 = sphi 0, %s287
    %s305 = sphi 0, %s305
    %s307 = sphi 0, %s305
    %s308 = sphi 0, %s307
    %s322 = sphi 0, %s308
    %s330 = sphi 0, %s332
    %s333 = sphi 0, %s330
    %s334 = sphi 0, %s333
    %s350 = sphi 0, %s334
  $region4: #{tpu_custom_call.1} parent=0 // loop_header_branch
    %22 = sbr.rel (%p20) target = $region8
  $region5: #{tpu_custom_call.1} parent=0 // loop_body
    %s24 = ssub.s32 %s19, 1
    %s25 = ssub.s32 %s19, 2
    %s32 = sadd.s32 1, %s27
    %p33 = scmp.ge.s32.totalorder %s32, 1
    %s34 = scalar_select %p33, 0, %s32
    %s35 = sadd.s32 1, %s26
    %s36 = scalar_select %p33, %s35, %s26
    %p37 = scmp.ge.s32.totalorder %s36, 2
    %s38 = scalar_select %p37, 0, %s36
    %s39 = ssub.s32 %s26, %s38
    %s40 = ssub.s32 %s27, %s34
    %s41 = sor.u32 %s39, %s40
    %p42 = scmp.eq.s32.totalorder %s41, 0
    %s44 = sadd.s32 %s43, 1
    %s45 = scalar_select %p42, %s43, %s44
    %p48 = pneg %p42
    %p49 = scmp.eq.s32.totalorder %s19, 1
    %p50 = por %p48, %p49
    %p51 = scmp.ne.s32.totalorder %s43, %s46
    %p52 = scmp.eq.s32.totalorder %s19, 0
    %p53 = por %p51, %p52
    %p54 = scmp.ne.s32.totalorder %s43, %s46
    %p55 = scmp.eq.s32.totalorder %s24, 1
    %p56 = por %p54, %p55
    %p57 = scmp.ne.s32.totalorder %s46, %s47
    %p58 = scmp.eq.s32.totalorder %s24, 0
    %p59 = por %p57, %p58
    %p60 = scmp.ne.s32.totalorder %s46, %s47
    %p61 = scmp.eq.s32.totalorder %s25, 1
    %p62 = por %p60, %p61
    %p64 = scmp.ne.s32.totalorder %s47, %s63
    %p65 = scmp.eq.s32.totalorder %s25, 0
    %p66 = por %p64, %p65
    %s67 = ssub.s32 %s26, %s38
    %s68 = ssub.s32 %s27, %s34
    %s69 = sor.u32 %s67, %s68
    %p70 = scmp.eq.s32.totalorder %s69, 0
    %s72 = sadd.s32 %s71, 1
    %s73 = scalar_select %p70, %s71, %s72
    %p76 = pneg %p70
    %p77 = scmp.eq.s32.totalorder %s19, 1
    %p78 = por %p76, %p77
    %p79 = scmp.ne.s32.totalorder %s71, %s74
    %p80 = scmp.eq.s32.totalorder %s19, 0
    %p81 = por %p79, %p80
    %p82 = scmp.ne.s32.totalorder %s71, %s74
    %p83 = scmp.eq.s32.totalorder %s24, 1
    %p84 = por %p82, %p83
    %p85 = scmp.ne.s32.totalorder %s74, %s75
    %p86 = scmp.eq.s32.totalorder %s24, 0
    %p87 = por %p85, %p86
    %p88 = scmp.ne.s32.totalorder %s74, %s75
    %p89 = scmp.eq.s32.totalorder %s25, 1
    %p90 = por %p88, %p89
    %p92 = scmp.ne.s32.totalorder %s75, %s91
    %p93 = scmp.eq.s32.totalorder %s25, 0
    %p94 = por %p92, %p93
    %s96 = sadd.s32 %s95, 1
    %p99 = scmp.eq.s32.totalorder %s19, 1
    %p100 = scmp.ne.s32.totalorder %s95, %s97
    %p101 = scmp.eq.s32.totalorder %s19, 0
    %p102 = por %p100, %p101
    %p103 = scmp.ne.s32.totalorder %s95, %s97
    %p104 = scmp.eq.s32.totalorder %s24, 1
    %p105 = por %p103, %p104
    %p106 = scmp.ne.s32.totalorder %s97, %s98
    %p107 = scmp.eq.s32.totalorder %s24, 0
    %p108 = por %p106, %p107
    %p109 = scmp.ne.s32.totalorder %s97, %s98
    %p110 = scmp.eq.s32.totalorder %s25, 1
    %p111 = por %p109, %p110
    %p113 = scmp.ne.s32.totalorder %s98, %s112
    %p114 = scmp.eq.s32.totalorder %s25, 0
    %p115 = por %p113, %p114
    %s117 = sadd.s32 %s116, 1
    %p120 = scmp.eq.s32.totalorder %s19, 1
    %p121 = scmp.ne.s32.totalorder %s116, %s118
    %p122 = scmp.eq.s32.totalorder %s19, 0
    %p123 = por %p121, %p122
    %p124 = scmp.ne.s32.totalorder %s116, %s118
    %p125 = scmp.eq.s32.totalorder %s24, 1
    %p126 = por %p124, %p125
    %p127 = scmp.ne.s32.totalorder %s118, %s119
    %p128 = scmp.eq.s32.totalorder %s24, 0
    %p129 = por %p127, %p128
    %p130 = scmp.ne.s32.totalorder %s118, %s119
    %p131 = scmp.eq.s32.totalorder %s25, 1
    %p132 = por %p130, %p131
    %p134 = scmp.ne.s32.totalorder %s119, %s133
    %p135 = scmp.eq.s32.totalorder %s25, 0
    %p136 = por %p134, %p135
    %s138 = sadd.s32 %s137, 1
    %p141 = scmp.eq.s32.totalorder %s19, 1
    %p142 = scmp.ne.s32.totalorder %s137, %s139
    %p143 = scmp.eq.s32.totalorder %s19, 0
    %p144 = por %p142, %p143
    %p145 = scmp.ne.s32.totalorder %s137, %s139
    %p146 = scmp.eq.s32.totalorder %s24, 1
    %p147 = por %p145, %p146
    %p148 = scmp.ne.s32.totalorder %s139, %s140
    %p149 = scmp.eq.s32.totalorder %s24, 0
    %p150 = por %p148, %p149
    %p151 = scmp.ne.s32.totalorder %s139, %s140
    %p152 = scmp.eq.s32.totalorder %s25, 1
    %p153 = por %p151, %p152
    %p155 = scmp.ne.s32.totalorder %s140, %s154
    %p156 = scmp.eq.s32.totalorder %s25, 0
    %p157 = por %p155, %p156
    %s159 = sadd.s32 %s158, 1
    %p162 = scmp.eq.s32.totalorder %s19, 1
    %p163 = scmp.ne.s32.totalorder %s158, %s160
    %p164 = scmp.eq.s32.totalorder %s19, 0
    %p165 = por %p163, %p164
    %p166 = scmp.ne.s32.totalorder %s158, %s160
    %p167 = scmp.eq.s32.totalorder %s24, 1
    %p168 = por %p166, %p167
    %p169 = scmp.ne.s32.totalorder %s160, %s161
    %p170 = scmp.eq.s32.totalorder %s24, 0
    %p171 = por %p169, %p170
    %p172 = scmp.ne.s32.totalorder %s160, %s161
    %p173 = scmp.eq.s32.totalorder %s25, 1
    %p174 = por %p172, %p173
    %p176 = scmp.ne.s32.totalorder %s161, %s175
    %p177 = scmp.eq.s32.totalorder %s25, 0
    %p178 = por %p176, %p177
    %s180 = sadd.s32 %s179, 1
    %p183 = scmp.eq.s32.totalorder %s19, 1
    %p184 = scmp.ne.s32.totalorder %s179, %s181
    %p185 = scmp.eq.s32.totalorder %s19, 0
    %p186 = por %p184, %p185
    %p187 = scmp.ne.s32.totalorder %s179, %s181
    %p188 = scmp.eq.s32.totalorder %s24, 1
    %p189 = por %p187, %p188
    %p190 = scmp.ne.s32.totalorder %s181, %s182
    %p191 = scmp.eq.s32.totalorder %s24, 0
    %p192 = por %p190, %p191
    %p193 = scmp.ne.s32.totalorder %s181, %s182
    %p194 = scmp.eq.s32.totalorder %s25, 1
    %p195 = por %p193, %p194
    %p197 = scmp.ne.s32.totalorder %s182, %s196
    %p198 = scmp.eq.s32.totalorder %s25, 0
    %p199 = por %p197, %p198
    %s201 = sadd.s32 %s200, 1
    %p204 = scmp.eq.s32.totalorder %s19, 1
    %p205 = scmp.ne.s32.totalorder %s200, %s202
    %p206 = scmp.eq.s32.totalorder %s19, 0
    %p207 = por %p205, %p206
    %p208 = scmp.ne.s32.totalorder %s200, %s202
    %p209 = scmp.eq.s32.totalorder %s24, 1
    %p210 = por %p208, %p209
    %p211 = scmp.ne.s32.totalorder %s202, %s203
    %p212 = scmp.eq.s32.totalorder %s24, 0
    %p213 = por %p211, %p212
    %p214 = scmp.ne.s32.totalorder %s202, %s203
    %p215 = scmp.eq.s32.totalorder %s25, 1
    %p216 = por %p214, %p215
    %p218 = scmp.ne.s32.totalorder %s203, %s217
    %p219 = scmp.eq.s32.totalorder %s25, 0
    %p220 = por %p218, %p219
    %s222 = sadd.s32 %s221, 1
    %p225 = scmp.eq.s32.totalorder %s19, 1
    %p226 = scmp.ne.s32.totalorder %s221, %s223
    %p227 = scmp.eq.s32.totalorder %s19, 0
    %p228 = por %p226, %p227
    %p229 = scmp.ne.s32.totalorder %s221, %s223
    %p230 = scmp.eq.s32.totalorder %s24, 1
    %p231 = por %p229, %p230
    %p232 = scmp.ne.s32.totalorder %s223, %s224
    %p233 = scmp.eq.s32.totalorder %s24, 0
    %p234 = por %p232, %p233
    %p235 = scmp.ne.s32.totalorder %s223, %s224
    %p236 = scmp.eq.s32.totalorder %s25, 1
    %p237 = por %p235, %p236
    %p239 = scmp.ne.s32.totalorder %s224, %s238
    %p240 = scmp.eq.s32.totalorder %s25, 0
    %p241 = por %p239, %p240
    %s243 = sadd.s32 %s242, 1
    %p246 = scmp.eq.s32.totalorder %s19, 1
    %p247 = scmp.ne.s32.totalorder %s242, %s244
    %p248 = scmp.eq.s32.totalorder %s19, 0
    %p249 = por %p247, %p248
    %p250 = scmp.ne.s32.totalorder %s242, %s244
    %p251 = scmp.eq.s32.totalorder %s24, 1
    %p252 = por %p250, %p251
    %p253 = scmp.ne.s32.totalorder %s244, %s245
    %p254 = scmp.eq.s32.totalorder %s24, 0
    %p255 = por %p253, %p254
    %p256 = scmp.ne.s32.totalorder %s244, %s245
    %p257 = scmp.eq.s32.totalorder %s25, 1
    %p258 = por %p256, %p257
    %p260 = scmp.ne.s32.totalorder %s245, %s259
    %p261 = scmp.eq.s32.totalorder %s25, 0
    %p262 = por %p260, %p261
    %s264 = sadd.s32 %s263, 1
    %p267 = scmp.eq.s32.totalorder %s19, 1
    %p268 = scmp.ne.s32.totalorder %s263, %s265
    %p269 = scmp.eq.s32.totalorder %s19, 0
    %p270 = por %p268, %p269
    %p271 = scmp.ne.s32.totalorder %s263, %s265
    %p272 = scmp.eq.s32.totalorder %s24, 1
    %p273 = por %p271, %p272
    %p274 = scmp.ne.s32.totalorder %s265, %s266
    %p275 = scmp.eq.s32.totalorder %s24, 0
    %p276 = por %p274, %p275
    %p277 = scmp.ne.s32.totalorder %s265, %s266
    %p278 = scmp.eq.s32.totalorder %s25, 1
    %p279 = por %p277, %p278
    %p281 = scmp.ne.s32.totalorder %s266, %s280
    %p282 = scmp.eq.s32.totalorder %s25, 0
    %p283 = por %p281, %p282
    %s285 = sadd.s32 %s284, 1
    %p288 = scmp.eq.s32.totalorder %s19, 1
    %p289 = scmp.ne.s32.totalorder %s284, %s286
    %p290 = scmp.eq.s32.totalorder %s19, 0
    %p291 = por %p289, %p290
    %p292 = scmp.ne.s32.totalorder %s284, %s286
    %p293 = scmp.eq.s32.totalorder %s24, 1
    %p294 = por %p292, %p293
    %p295 = scmp.ne.s32.totalorder %s286, %s287
    %p296 = scmp.eq.s32.totalorder %s24, 0
    %p297 = por %p295, %p296
    %p298 = scmp.ne.s32.totalorder %s286, %s287
    %p299 = scmp.eq.s32.totalorder %s25, 1
    %p300 = por %p298, %p299
    %p302 = scmp.ne.s32.totalorder %s287, %s301
    %p303 = scmp.eq.s32.totalorder %s25, 0
    %p304 = por %p302, %p303
    %s306 = sadd.s32 %s305, 1
    %p309 = scmp.eq.s32.totalorder %s19, 1
    %p310 = scmp.ne.s32.totalorder %s305, %s307
    %p311 = scmp.eq.s32.totalorder %s19, 0
    %p312 = por %p310, %p311
    %p313 = scmp.ne.s32.totalorder %s305, %s307
    %p314 = scmp.eq.s32.totalorder %s24, 1
    %p315 = por %p313, %p314
    %p316 = scmp.ne.s32.totalorder %s307, %s308
    %p317 = scmp.eq.s32.totalorder %s24, 0
    %p318 = por %p316, %p317
    %p319 = scmp.ne.s32.totalorder %s307, %s308
    %p320 = scmp.eq.s32.totalorder %s25, 1
    %p321 = por %p319, %p320
    %p323 = scmp.ne.s32.totalorder %s308, %s322
    %p324 = scmp.eq.s32.totalorder %s25, 0
    %p325 = por %p323, %p324
    %s326 = ssub.s32 %s26, %s38
    %s327 = ssub.s32 %s27, %s34
    %s328 = sor.u32 %s326, %s327
    %p329 = scmp.eq.s32.totalorder %s328, 0
    %s331 = sadd.s32 %s330, 1
    %s332 = scalar_select %p329, %s330, %s331
    %p335 = pneg %p329
    %p336 = scmp.eq.s32.totalorder %s19, 1
    %p337 = por %p335, %p336
    %p338 = scmp.ne.s32.totalorder %s330, %s333
    %p339 = scmp.eq.s32.totalorder %s19, 0
    %p340 = por %p338, %p339
    %p341 = scmp.ne.s32.totalorder %s330, %s333
    %p342 = scmp.eq.s32.totalorder %s24, 1
    %p343 = por %p341, %p342
    %p344 = scmp.ne.s32.totalorder %s333, %s334
    %p345 = scmp.eq.s32.totalorder %s24, 0
    %p346 = por %p344, %p345
    %p347 = scmp.ne.s32.totalorder %s333, %s334
    %p348 = scmp.eq.s32.totalorder %s25, 1
    %p349 = por %p347, %p348
    %p351 = scmp.ne.s32.totalorder %s334, %s350
    %p352 = scmp.eq.s32.totalorder %s25, 0
    %p353 = por %p351, %p352
    %p354 = scmp.le.s32.totalorder 1, %s19
    %p355 = scmp.lt.s32.totalorder %s19, 3
    %p356 = pnand %p354, %p355
    %p357 = pneg %p356
    // Predicated region
    $region9: #{tpu_custom_call.1} parent=5 // pred_check
      _
    $region10: #{tpu_custom_call.1} parent=5 // pred_check_branch
      %359 = sbr.rel (%p356) target = $region12
    $region11: #{tpu_custom_call.1} parent=5 // pred_region
      %s360 = ssub.s32 %s19, 1
      // Predicated region
      $region13: #{tpu_custom_call.1} parent=11 // pred_check
        %p361 = pneg %p108
      $region14: #{tpu_custom_call.1} parent=11 // pred_check_branch
        %363 = sbr.rel (%p361) target = $region16
      $region15: #{tpu_custom_call.1} parent=11 // pred_region
        _
      $region16: #{tpu_custom_call.1} parent=11 // pred_fallthru
        _
      // Predicated region
      $region17: #{tpu_custom_call.1} parent=11 // pred_check
        %p364 = pneg %p129
      $region18: #{tpu_custom_call.1} parent=11 // pred_check_branch
        %366 = sbr.rel (%p364) target = $region20
      $region19: #{tpu_custom_call.1} parent=11 // pred_region
        _
      $region20: #{tpu_custom_call.1} parent=11 // pred_fallthru
        _
      // Predicated region
      $region21: #{tpu_custom_call.1} parent=11 // pred_check
        %p367 = pneg %p150
      $region22: #{tpu_custom_call.1} parent=11 // pred_check_branch
        %369 = sbr.rel (%p367) target = $region24
      $region23: #{tpu_custom_call.1} parent=11 // pred_region
        _
      $region24: #{tpu_custom_call.1} parent=11 // pred_fallthru
        _
      // Predicated region
      $region25: #{tpu_custom_call.1} parent=11 // pred_check
        %p370 = pneg %p171
      $region26: #{tpu_custom_call.1} parent=11 // pred_check_branch
        %372 = sbr.rel (%p370) target = $region28
      $region27: #{tpu_custom_call.1} parent=11 // pred_region
        _
      $region28: #{tpu_custom_call.1} parent=11 // pred_fallthru
        _
      // Predicated region
      $region29: #{tpu_custom_call.1} parent=11 // pred_check
        %p373 = pneg %p192
      $region30: #{tpu_custom_call.1} parent=11 // pred_check_branch
        %375 = sbr.rel (%p373) target = $region32
      $region31: #{tpu_custom_call.1} parent=11 // pred_region
        _
      $region32: #{tpu_custom_call.1} parent=11 // pred_fallthru
        _
      // Predicated region
      $region33: #{tpu_custom_call.1} parent=11 // pred_check
        %p376 = pneg %p213
      $region34: #{tpu_custom_call.1} parent=11 // pred_check_branch
        %378 = sbr.rel (%p376) target = $region36
      $region35: #{tpu_custom_call.1} parent=11 // pred_region
        _
      $region36: #{tpu_custom_call.1} parent=11 // pred_fallthru
        _
      // Predicated region
      $region37: #{tpu_custom_call.1} parent=11 // pred_check
        %p379 = pneg %p234
      $region38: #{tpu_custom_call.1} parent=11 // pred_check_branch
        %381 = sbr.rel (%p379) target = $region40
      $region39: #{tpu_custom_call.1} parent=11 // pred_region
        _
      $region40: #{tpu_custom_call.1} parent=11 // pred_fallthru
        _
      // Predicated region
      $region41: #{tpu_custom_call.1} parent=11 // pred_check
        %p382 = pneg %p255
      $region42: #{tpu_custom_call.1} parent=11 // pred_check_branch
        %384 = sbr.rel (%p382) target = $region44
      $region43: #{tpu_custom_call.1} parent=11 // pred_region
        _
      $region44: #{tpu_custom_call.1} parent=11 // pred_fallthru
        _
      // Predicated region
      $region45: #{tpu_custom_call.1} parent=11 // pred_check
        %p385 = pneg %p276
      $region46: #{tpu_custom_call.1} parent=11 // pred_check_branch
        %387 = sbr.rel (%p385) target = $region48
      $region47: #{tpu_custom_call.1} parent=11 // pred_region
        _
      $region48: #{tpu_custom_call.1} parent=11 // pred_fallthru
        _
      // Predicated region
      $region49: #{tpu_custom_call.1} parent=11 // pred_check
        %p388 = pneg %p297
      $region50: #{tpu_custom_call.1} parent=11 // pred_check_branch
        %390 = sbr.rel (%p388) target = $region52
      $region51: #{tpu_custom_call.1} parent=11 // pred_region
        _
      $region52: #{tpu_custom_call.1} parent=11 // pred_fallthru
        _
      // Predicated region
      $region53: #{tpu_custom_call.1} parent=11 // pred_check
        %p391 = pneg %p318
      $region54: #{tpu_custom_call.1} parent=11 // pred_check_branch
        %393 = sbr.rel (%p391) target = $region56
      $region55: #{tpu_custom_call.1} parent=11 // pred_region
        _
      $region56: #{tpu_custom_call.1} parent=11 // pred_fallthru
        _
    $region12: #{tpu_custom_call.1} parent=5 // pred_fallthru
      _
    %p394 = scmp.lt.s32.totalorder %s19, 2
    // Predicated region
    $region57: #{tpu_custom_call.1} parent=5 // pred_check
      %p395 = pneg %p394
    $region58: #{tpu_custom_call.1} parent=5 // pred_check_branch
      %397 = sbr.rel (%p395) target = $region60
    $region59: #{tpu_custom_call.1} parent=5 // pred_region
      // Predicated region
      $region61: #{tpu_custom_call.1} parent=59 // pred_check
        %p398 = pneg %p53
      $region62: #{tpu_custom_call.1} parent=59 // pred_check_branch
        %400 = sbr.rel (%p398) target = $region64
      $region63: #{tpu_custom_call.1} parent=59 // pred_region
        %p401 = scmp.lt.s32.totalorder %s26, 1
        %s402 = scalar_select %p401, %s26, 1
        %p403 = scmp.lt.s32.totalorder %s27, 0
        %s404 = scalar_select %p403, %s27, 0
        %s405 = smul.addr %s402, 8
        %s406 = sadd.s32 %s404, %s405
        %s407 = smul.addr %s406, 2
        %s408 = scalar_lea.vmem %s0, %s407
      $region64: #{tpu_custom_call.1} parent=59 // pred_fallthru
        _
      // Predicated region
      $region65: #{tpu_custom_call.1} parent=59 // pred_check
        %p409 = pneg %p81
      $region66: #{tpu_custom_call.1} parent=59 // pred_check_branch
        %411 = sbr.rel (%p409) target = $region68
      $region67: #{tpu_custom_call.1} parent=59 // pred_region
        %p412 = scmp.lt.s32.totalorder %s26, 1
        %s413 = scalar_select %p412, %s26, 1
        %p414 = scmp.lt.s32.totalorder %s27, 0
        %s415 = scalar_select %p414, %s27, 0
        %s416 = smul.addr %s413, 8
        %s417 = sadd.s32 %s415, %s416
        %s418 = smul.addr %s417, 4
        %s419 = scalar_lea.vmem %s1, %s418
      $region68: #{tpu_custom_call.1} parent=59 // pred_fallthru
        _
    $region60: #{tpu_custom_call.1} parent=5 // pred_fallthru
      _
    %p420 = scmp.le.s32.totalorder 1, %s19
    %p421 = scmp.lt.s32.totalorder %s19, 3
    %p422 = pnand %p420, %p421
    %p423 = pneg %p422
    // Predicated region
    $region69: #{tpu_custom_call.1} parent=5 // pred_check
      _
    $region70: #{tpu_custom_call.1} parent=5 // pred_check_branch
      %425 = sbr.rel (%p422) target = $region72
    $region71: #{tpu_custom_call.1} parent=5 // pred_region
      %s426 = ssub.s32 %s19, 1
      %p427 = scmp.lt.s32.totalorder %s28, 1
      %s428 = scalar_select %p427, %s28, 1
      %p429 = scmp.lt.s32.totalorder %s29, 0
      %s430 = scalar_select %p429, %s29, 0
      %s431 = smul.addr %s428, 8
      %s432 = sadd.s32 %s430, %s431
      %s433 = smul.addr %s432, 2
      %s434 = scalar_lea.vmem %s0, %s433
      %p435 = pneg %p59
      %p436 = pneg %p56
      %p437 = scmp.lt.s32.totalorder %s28, 1
      %s438 = scalar_select %p437, %s28, 1
      %p439 = scmp.lt.s32.totalorder %s29, 0
      %s440 = scalar_select %p439, %s29, 0
      %s441 = smul.addr %s438, 8
      %s442 = sadd.s32 %s440, %s441
      %s443 = smul.addr %s442, 4
      %s444 = scalar_lea.vmem %s1, %s443
      %p445 = pneg %p87
      %p446 = pneg %p84
      %p447 = pneg %p108
      %p448 = pneg %p105
      %p449 = pneg %p129
      %p450 = pneg %p126
      %p451 = pneg %p150
      %p452 = pneg %p147
      %p453 = pneg %p171
      %p454 = pneg %p168
      %p455 = pneg %p192
      %p456 = pneg %p189
      %p457 = pneg %p213
      %p458 = pneg %p210
      %p459 = pneg %p234
      %p460 = pneg %p231
      %p461 = pneg %p255
      %p462 = pneg %p252
      %p463 = pneg %p276
      %p464 = pneg %p273
      %p465 = pneg %p297
      %p466 = pneg %p294
      %p467 = pneg %p318
      %p468 = pneg %p315
      %p469 = pneg %p346
      %p470 = pneg %p343
      %p471 = scmp.lt.s32.totalorder %s28, 1
      %s472 = scalar_select %p471, %s28, 1
      %p473 = scmp.lt.s32.totalorder %s29, 0
      %s474 = scalar_select %p473, %s29, 0
      %s475 = smul.addr %s472, 4
      %s476 = sadd.s32 %s474, %s475
      %s477 = smul.addr %s476, 4
      %s478 = scalar_lea.vmem %s13, %s477
      %p479 = scmp.lt.s32.totalorder %s28, 1
      %s480 = scalar_select %p479, %s28, 1
      %p481 = scmp.lt.s32.totalorder %s29, 0
      %s482 = scalar_select %p481, %s29, 0
      %s483 = smul.addr %s480, 8
      %s484 = sadd.s32 %s482, %s483
      %s485 = smul.addr %s484, 2
      %s486 = scalar_lea.vmem %s0, %s485
      %p487 = scmp.lt.s32.totalorder %s28, 1
      %s488 = scalar_select %p487, %s28, 1
      %p489 = scmp.lt.s32.totalorder %s29, 0
      %s490 = scalar_select %p489, %s29, 0
      %s491 = smul.addr %s488, 8
      %s492 = sadd.s32 %s490, %s491
      %s493 = smul.addr %s492, 4
      %s494 = scalar_lea.vmem %s1, %s493
      %p495 = scmp.lt.s32.totalorder %s28, 1
      %s496 = scalar_select %p495, %s28, 1
      %p497 = scmp.lt.s32.totalorder %s29, 0
      %s498 = scalar_select %p497, %s29, 0
      %s499 = smul.addr %s496, 4
      %s500 = sadd.s32 %s498, %s499
      %s501 = smul.addr %s500, 4
      %s502 = scalar_lea.vmem %s13, %s501
      %v504 = vld [vmem:[%s12] sm:$0xff]
      %v505 = vld [vmem:[%s12 + $0x8] sm:$0xff]
      %v506 = vld [vmem:[%s12 + $0x10] sm:$0xff]
      %v507 = vld [vmem:[%s12 + $0x18] sm:$0xff]
      %v508 = vld [vmem:[%s486] sm:$0x1]
      %v509 = vld [vmem:[%s486 + $0x2] sm:$0x1]
      %v510 = vld [vmem:[%s486 + $0x4] sm:$0x1]
      %v511 = vld [vmem:[%s486 + $0x6] sm:$0x1]
      %v512 = vld [vmem:[%s486 + $0x8] sm:$0x1]
      %v513 = vld [vmem:[%s486 + $0xa] sm:$0x1]
      %v514 = vld [vmem:[%s486 + $0xc] sm:$0x1]
      %v515 = vld [vmem:[%s486 + $0xe] sm:$0x1]
      %v516 = vld [vmem:[%s486] sm:$0x2]
      %v517 = vld [vmem:[%s486 + $0x2] sm:$0x2]
      %v518 = vld [vmem:[%s486 + $0x4] sm:$0x2]
      %v519 = vld [vmem:[%s486 + $0x6] sm:$0x2]
      %v520 = vld [vmem:[%s486 + $0x8] sm:$0x2]
      %v521 = vld [vmem:[%s486 + $0xa] sm:$0x2]
      %v522 = vld [vmem:[%s486 + $0xc] sm:$0x2]
      %v523 = vld [vmem:[%s486 + $0xe] sm:$0x2]
      %525 = vst [vmem:[#allocation1] ss:$4 sm:$0xff] %v508
      %v526 = vld.sshfl [vmem:[#allocation1] sm:$0xff pattern:$0x73625140]
      %s529 = scalar_lea.vmem [#allocation1], 32
      %530 = vst [vmem:[%s529] ss:$4 sm:$0xff] %v509
      %v531 = vld.sshfl [vmem:[#allocation1 + $0x20] sm:$0xff pattern:$0x73625140]
      %534 = vst [vmem:[#allocation1] ss:$4 sm:$0xff] %v510
      %v535 = vld.sshfl [vmem:[#allocation1] sm:$0xff pattern:$0x73625140]
      %538 = vst [vmem:[%s529] ss:$4 sm:$0xff] %v511
      %v539 = vld.sshfl [vmem:[#allocation1 + $0x20] sm:$0xff pattern:$0x73625140]
      %542 = vst [vmem:[#allocation1] ss:$4 sm:$0xff] %v512
      %v543 = vld.sshfl [vmem:[#allocation1] sm:$0xff pattern:$0x73625140]
      %546 = vst [vmem:[%s529] ss:$4 sm:$0xff] %v513
      %v547 = vld.sshfl [vmem:[#allocation1 + $0x20] sm:$0xff pattern:$0x73625140]
      %550 = vst [vmem:[#allocation1] ss:$4 sm:$0xff] %v514
      %v551 = vld.sshfl [vmem:[#allocation1] sm:$0xff pattern:$0x73625140]
      %554 = vst [vmem:[%s529] ss:$4 sm:$0xff] %v515
      %v555 = vld.sshfl [vmem:[#allocation1 + $0x20] sm:$0xff pattern:$0x73625140]
      %v557 = vunpack.c.l.b16 %v526
      %v558 = vunpack.c.l.b16 %v531
      %v559 = vunpack.c.l.b16 %v535
      %v560 = vunpack.c.l.b16 %v539
      %v561 = vunpack.c.l.b16 %v543
      %v562 = vunpack.c.l.b16 %v547
      %v563 = vunpack.c.l.b16 %v551
      %v564 = vunpack.c.l.b16 %v555
      %v565 = vrot.slane %v558, 7
      %vm566 = vcmask 1041409
      %v567 = vsel %vm566, %v565, %v557
      %v568 = vrot.slane %v559, 6
      %vm569 = vcmask 1042434
      %v570 = vsel %vm569, %v568, %v567
      %v571 = vrot.slane %v560, 5
      %vm572 = vcmask 1043459
      %v573 = vsel %vm572, %v571, %v570
      %v574 = vrot.slane %v561, 4
      %vm575 = vcmask 1044484
      %v576 = vsel %vm575, %v574, %v573
      %v577 = vrot.slane %v562, 3
      %vm578 = vcmask 1045509
      %v579 = vsel %vm578, %v577, %v576
      %v580 = vrot.slane %v563, 2
      %vm581 = vcmask 1046534
      %v582 = vsel %vm581, %v580, %v579
      %v583 = vrot.slane %v564, 1
      %vm584 = vcmask 1047559
      %v585 = vsel %vm584, %v583, %v582
      %v586 = vpack.c.b16 %v585, %v585
      %587 = vst [vmem:[#allocation1] ss:$4 sm:$0xff] %v508
      %v588 = vld.sshfl [vmem:[#allocation1] sm:$0xff pattern:$0x73625140]
      %s590 = scalar_lea.vmem [#allocation1], 32
      %591 = vst [vmem:[%s590] ss:$4 sm:$0xff] %v509
      %v592 = vld.sshfl [vmem:[#allocation1 + $0x20] sm:$0xff pattern:$0x73625140]
      %594 = vst [vmem:[#allocation1] ss:$4 sm:$0xff] %v510
      %v595 = vld.sshfl [vmem:[#allocation1] sm:$0xff pattern:$0x73625140]
      %597 = vst [vmem:[%s590] ss:$4 sm:$0xff] %v511
      %v598 = vld.sshfl [vmem:[#allocation1 + $0x20] sm:$0xff pattern:$0x73625140]
      %600 = vst [vmem:[#allocation1] ss:$4 sm:$0xff] %v512
      %v601 = vld.sshfl [vmem:[#allocation1] sm:$0xff pattern:$0x73625140]
      %603 = vst [vmem:[%s590] ss:$4 sm:$0xff] %v513
      %v604 = vld.sshfl [vmem:[#allocation1 + $0x20] sm:$0xff pattern:$0x73625140]
      %606 = vst [vmem:[#allocation1] ss:$4 sm:$0xff] %v514
      %v607 = vld.sshfl [vmem:[#allocation1] sm:$0xff pattern:$0x73625140]
      %609 = vst [vmem:[%s590] ss:$4 sm:$0xff] %v515
      %v610 = vld.sshfl [vmem:[#allocation1 + $0x20] sm:$0xff pattern:$0x73625140]
      %v612 = vunpack.c.l.b16 %v588
      %v613 = vunpack.c.l.b16 %v592
      %v614 = vunpack.c.l.b16 %v595
      %v615 = vunpack.c.l.b16 %v598
      %v616 = vunpack.c.l.b16 %v601
      %v617 = vunpack.c.l.b16 %v604
      %v618 = vunpack.c.l.b16 %v607
      %v619 = vunpack.c.l.b16 %v610
      %v620 = vrot.slane %v612, 1
      %v621 = vsel %vm566, %v613, %v620
      %v622 = vrot.slane %v614, 7
      %v623 = vsel %vm569, %v622, %v621
      %v624 = vrot.slane %v615, 6
      %v625 = vsel %vm572, %v624, %v623
      %v626 = vrot.slane %v616, 5
      %v627 = vsel %vm575, %v626, %v625
      %v628 = vrot.slane %v617, 4
      %v629 = vsel %vm578, %v628, %v627
      %v630 = vrot.slane %v618, 3
      %v631 = vsel %vm581, %v630, %v629
      %v632 = vrot.slane %v619, 2
      %v633 = vsel %vm584, %v632, %v631
      %v634 = vpack.c.b16 %v633, %v633
      %635 = vrot.lane.b32.xlu0 %v634, 8
      %v636 = vpop.permute.xlu0 %635
      %638 = vst [vmem:[#allocation1] ss:$4 sm:$0xff] %v516
      %v639 = vld.sshfl [vmem:[#allocation1] sm:$0xff pattern:$0x73625140]
      %s642 = scalar_lea.vmem [#allocation1], 32
      %643 = vst [vmem:[%s642] ss:$4 sm:$0xff] %v517
      %v644 = vld.sshfl [vmem:[#allocation1 + $0x20] sm:$0xff pattern:$0x73625140]
      %647 = vst [vmem:[#allocation1] ss:$4 sm:$0xff] %v518
      %v648 = vld.sshfl [vmem:[#allocation1] sm:$0xff pattern:$0x73625140]
      %651 = vst [vmem:[%s642] ss:$4 sm:$0xff] %v519
      %v652 = vld.sshfl [vmem:[#allocation1 + $0x20] sm:$0xff pattern:$0x73625140]
      %655 = vst [vmem:[#allocation1] ss:$4 sm:$0xff] %v520
      %v656 = vld.sshfl [vmem:[#allocation1] sm:$0xff pattern:$0x73625140]
      %659 = vst [vmem:[%s642] ss:$4 sm:$0xff] %v521
      %v660 = vld.sshfl [vmem:[#allocation1 + $0x20] sm:$0xff pattern:$0x73625140]
      %663 = vst [vmem:[#allocation1] ss:$4 sm:$0xff] %v522
      %v664 = vld.sshfl [vmem:[#allocation1] sm:$0xff pattern:$0x73625140]
      %667 = vst [vmem:[%s642] ss:$4 sm:$0xff] %v523
      %v668 = vld.sshfl [vmem:[#allocation1 + $0x20] sm:$0xff pattern:$0x73625140]
      %v670 = vunpack.c.l.b16 %v639
      %v671 = vunpack.c.l.b16 %v644
      %v672 = vunpack.c.l.b16 %v648
      %v673 = vunpack.c.l.b16 %v652
      %v674 = vunpack.c.l.b16 %v656
      %v675 = vunpack.c.l.b16 %v660
      %v676 = vunpack.c.l.b16 %v664
      %v677 = vunpack.c.l.b16 %v668
      %v678 = vrot.slane %v670, 2
      %v679 = vrot.slane %v671, 1
      %v680 = vsel %vm566, %v679, %v678
      %v681 = vsel %vm569, %v672, %v680
      %v682 = vrot.slane %v673, 7
      %v683 = vsel %vm572, %v682, %v681
      %v684 = vrot.slane %v674, 6
      %v685 = vsel %vm575, %v684, %v683
      %v686 = vrot.slane %v675, 5
      %v687 = vsel %vm578, %v686, %v685
      %v688 = vrot.slane %v676, 4
      %v689 = vsel %vm581, %v688, %v687
      %v690 = vrot.slane %v677, 3
      %v691 = vsel %vm584, %v690, %v689
      %v692 = vpack.c.b16 %v691, %v691
      %693 = vrot.lane.b32.xlu0 %v692, 16
      %v694 = vpop.permute.xlu0 %693
      %695 = vst [vmem:[#allocation1] ss:$4 sm:$0xff] %v516
      %v696 = vld.sshfl [vmem:[#allocation1] sm:$0xff pattern:$0x73625140]
      %s698 = scalar_lea.vmem [#allocation1], 32
      %699 = vst [vmem:[%s698] ss:$4 sm:$0xff] %v517
      %v700 = vld.sshfl [vmem:[#allocation1 + $0x20] sm:$0xff pattern:$0x73625140]
      %702 = vst [vmem:[#allocation1] ss:$4 sm:$0xff] %v518
      %v703 = vld.sshfl [vmem:[#allocation1] sm:$0xff pattern:$0x73625140]
      %705 = vst [vmem:[%s698] ss:$4 sm:$0xff] %v519
      %v706 = vld.sshfl [vmem:[#allocation1 + $0x20] sm:$0xff pattern:$0x73625140]
      %708 = vst [vmem:[#allocation1] ss:$4 sm:$0xff] %v520
      %v709 = vld.sshfl [vmem:[#allocation1] sm:$0xff pattern:$0x73625140]
      %711 = vst [vmem:[%s698] ss:$4 sm:$0xff] %v521
      %v712 = vld.sshfl [vmem:[#allocation1 + $0x20] sm:$0xff pattern:$0x73625140]
      %714 = vst [vmem:[#allocation1] ss:$4 sm:$0xff] %v522
      %v715 = vld.sshfl [vmem:[#allocation1] sm:$0xff pattern:$0x73625140]
      %717 = vst [vmem:[%s698] ss:$4 sm:$0xff] %v523
      %v718 = vld.sshfl [vmem:[#allocation1 + $0x20] sm:$0xff pattern:$0x73625140]
      %v720 = vunpack.c.l.b16 %v696
      %v721 = vunpack.c.l.b16 %v700
      %v722 = vunpack.c.l.b16 %v703
      %v723 = vunpack.c.l.b16 %v706
      %v724 = vunpack.c.l.b16 %v709
      %v725 = vunpack.c.l.b16 %v712
      %v726 = vunpack.c.l.b16 %v715
      %v727 = vunpack.c.l.b16 %v718
      %v728 = vrot.slane %v720, 3
      %v729 = vrot.slane %v721, 2
      %v730 = vsel %vm566, %v729, %v728
      %v731 = vrot.slane %v722, 1
      %v732 = vsel %vm569, %v731, %v730
      %v733 = vsel %vm572, %v723, %v732
      %v734 = vrot.slane %v724, 7
      %v735 = vsel %vm575, %v734, %v733
      %v736 = vrot.slane %v725, 6
      %v737 = vsel %vm578, %v736, %v735
      %v738 = vrot.slane %v726, 5
      %v739 = vsel %vm581, %v738, %v737
      %v740 = vrot.slane %v727, 4
      %v741 = vsel %vm584, %v740, %v739
      %v742 = vpack.c.b16 %v741, %v741
      %743 = vrot.lane.b32.xlu0 %v742, 24
      %v744 = vpop.permute.xlu0 %743
      %vm745 = vcmask 64512
      %v748 = vsel %vm745, %v586, %v636
      %vm749 = vcmask 130048
      %v751 = vsel %vm749, %v748, %v694
      %vm752 = vcmask 195584
      %v754 = vsel %vm752, %v751, %v744
      %v755 = vld [vmem:[%s2] sm:$0xf]
      %v756 = vld [vmem:[%s3] sm:$0xff]
      %758 = vset.pattern.permute.xlu0 0
      %759 = vperm.xlu0 %758, %v756
      %v760 = vpop.permute.xlu0 %759
      %v763 = vsel %vm745, %v755, 0
      %vm765 = vcmask 1043456
      %v766 = vsel %vm765, %v754, 0
      %768 = vmatpush.bf16.msra.mxu0 0
      %769 = vmatpush.bf16.msra.mxu0 0
      %770 = vmatpush.bf16.msra.mxu0 0
      %771 = vmatpush.bf16.msra.mxu0 0
      %772 = vmatpush.bf16.msra.mxu0 0
      %773 = vmatpush.bf16.msra.mxu0 0
      %774 = vmatpush.bf16.msra.mxu0 0
      %775 = vmatpush.bf16.msra.mxu0 %v766
      %776 = vmatmul.bf16.gmra.mxu0 %v763
      %v777 = vpop.f32.mrf.mxu0
      %v778 = vadd.f32 %v760, %v777
      %v779 = vpop.f32.mrf.mxu0
      %780 = vdwg.mxu0
      %v781 = vmax.f32 %v778, 0.0
      %v782 = vld [vmem:[%s4] sm:$0xf]
      %v783 = vld [vmem:[%s4 + $0x4] sm:$0xf]
      %v784 = vld [vmem:[%s5] sm:$0xff]
      %v785 = vld [vmem:[%s5 + $0x8] sm:$0xff]
      %v786 = vpack.c.bf16 %v781, %v781
      %788 = vset.pattern.permute.xlu0 0
      %789 = vperm.xlu0 %788, %v784
      %v790 = vpop.permute.xlu0 %789
      %793 = vset.pattern.permute.xlu0 0
      %794 = vperm.xlu0 %793, %v785
      %v795 = vpop.permute.xlu0 %794
      %v799 = vunpack.c.l.b16 %v782
      %v800 = vunpack.c.l.b16 %v783
      %v801 = vpack.c.b16 %v800, %v799
      %v803 = vsel %vm745, %v801, 0
      %v806 = vsel %vm765, %v786, 0
      %808 = vmatpush.bf16.msra.mxu0 0
      %809 = vmatpush.bf16.msra.mxu0 0
      %810 = vmatpush.bf16.msra.mxu0 0
      %811 = vmatpush.bf16.msra.mxu0 0
      %812 = vmatpush.bf16.msra.mxu0 0
      %813 = vmatpush.bf16.msra.mxu0 0
      %814 = vmatpush.bf16.msra.mxu0 0
      %815 = vmatpush.bf16.msra.mxu0 %v806
      %816 = vmatmul.bf16.gmra.mxu0 %v803
      %v817 = vpop.f32.mrf.mxu0
      %v818 = vadd.f32 %v790, %v817
      %v819 = vpop.f32.mrf.mxu0
      %v820 = vadd.f32 %v795, %v819
      %821 = vdwg.mxu0
      %v822 = vmax.f32 %v818, 0.0
      %v823 = vmax.f32 %v820, 0.0
      %826 = vrot.lane.b32.xlu0 %v822, 120
      %v827 = vpop.permute.xlu0 %826
      %828 = vrot.lane.b32.xlu0 %v823, 120
      %v829 = vpop.permute.xlu0 %828
      %v832 = vmax.f32 %v822, %v827
      %v833 = vmax.f32 %v823, %v829
      %836 = vrot.lane.b32.xlu0 %v832, 112
      %v837 = vpop.permute.xlu0 %836
      %838 = vrot.lane.b32.xlu0 %v833, 112
      %v839 = vpop.permute.xlu0 %838
      %v842 = vmax.f32 %v832, %v837
      %v843 = vmax.f32 %v833, %v839
      %v844 = vld [vmem:[%s6] sm:$0xf]
      %v845 = vld [vmem:[%s6 + $0x4] sm:$0xf]
      %v846 = vld [vmem:[%s6 + $0x8] sm:$0xf]
      %v847 = vld [vmem:[%s6 + $0xc] sm:$0xf]
      %v848 = vpack.c.bf16 %v843, %v842
      %v849 = vld [vmem:[%s494] sm:$0x1]
      %v850 = vld [vmem:[%s494 + $0x4] sm:$0x1]
      %v851 = vld [vmem:[%s494 + $0x8] sm:$0x1]
      %v852 = vld [vmem:[%s494 + $0xc] sm:$0x1]
      %v853 = vld [vmem:[%s494 + $0x10] sm:$0x1]
      %v854 = vld [vmem:[%s494 + $0x14] sm:$0x1]
      %v855 = vld [vmem:[%s494 + $0x18] sm:$0x1]
      %v856 = vld [vmem:[%s494 + $0x1c] sm:$0x1]
      %v857 = vld [vmem:[%s494] sm:$0x2]
      %v858 = vld [vmem:[%s494 + $0x4] sm:$0x2]
      %v859 = vld [vmem:[%s494 + $0x8] sm:$0x2]
      %v860 = vld [vmem:[%s494 + $0xc] sm:$0x2]
      %v861 = vld [vmem:[%s494 + $0x10] sm:$0x2]
      %v862 = vld [vmem:[%s494 + $0x14] sm:$0x2]
      %v863 = vld [vmem:[%s494 + $0x18] sm:$0x2]
      %v864 = vld [vmem:[%s494 + $0x1c] sm:$0x2]
      %v865 = vld [vmem:[%s494] sm:$0x4]
      %v866 = vld [vmem:[%s494 + $0x4] sm:$0x4]
      %v867 = vld [vmem:[%s494 + $0x8] sm:$0x4]
      %v868 = vld [vmem:[%s494 + $0xc] sm:$0x4]
      %v869 = vld [vmem:[%s494 + $0x10] sm:$0x4]
      %v870 = vld [vmem:[%s494 + $0x14] sm:$0x4]
      %v871 = vld [vmem:[%s494 + $0x18] sm:$0x4]
      %v872 = vld [vmem:[%s494 + $0x1c] sm:$0x4]
      %v873 = vld [vmem:[%s494] sm:$0x8]
      %v874 = vld [vmem:[%s494 + $0x4] sm:$0x8]
      %v875 = vld [vmem:[%s494 + $0x8] sm:$0x8]
      %v876 = vld [vmem:[%s494 + $0xc] sm:$0x8]
      %v877 = vld [vmem:[%s494 + $0x10] sm:$0x8]
      %v878 = vld [vmem:[%s494 + $0x14] sm:$0x8]
      %v879 = vld [vmem:[%s494 + $0x18] sm:$0x8]
      %v880 = vld [vmem:[%s494 + $0x1c] sm:$0x8]
      %v889 = vunpack.c.l.b16 %v849
      %v890 = vunpack.c.l.b16 %v850
      %v891 = vunpack.c.l.b16 %v851
      %v892 = vunpack.c.l.b16 %v852
      %v893 = vunpack.c.l.b16 %v853
      %v894 = vunpack.c.l.b16 %v854
      %v895 = vunpack.c.l.b16 %v855
      %v896 = vunpack.c.l.b16 %v856
      %v897 = vpack.c.b16 %v889, %v889
      %v898 = vpack.c.b16 %v890, %v890
      %v899 = vpack.c.b16 %v891, %v891
      %v900 = vpack.c.b16 %v892, %v892
      %v901 = vpack.c.b16 %v893, %v893
      %v902 = vpack.c.b16 %v894, %v894
      %v903 = vpack.c.b16 %v895, %v895
      %v904 = vpack.c.b16 %v896, %v896
      %v905 = vunpack.c.l.b16 %v897
      %v906 = vunpack.c.l.b16 %v898
      %v907 = vunpack.c.l.b16 %v899
      %v908 = vunpack.c.l.b16 %v900
      %v909 = vunpack.c.l.b16 %v901
      %v910 = vunpack.c.l.b16 %v902
      %v911 = vunpack.c.l.b16 %v903
      %v912 = vunpack.c.l.b16 %v904
      %v913 = vrot.slane %v906, 7
      %v914 = vsel %vm566, %v913, %v905
      %v915 = vrot.slane %v907, 6
      %v916 = vsel %vm569, %v915, %v914
      %v917 = vrot.slane %v908, 5
      %v918 = vsel %vm572, %v917, %v916
      %v919 = vrot.slane %v909, 4
      %v920 = vsel %vm575, %v919, %v918
      %v921 = vrot.slane %v910, 3
      %v922 = vsel %vm578, %v921, %v920
      %v923 = vrot.slane %v911, 2
      %v924 = vsel %vm581, %v923, %v922
      %v925 = vrot.slane %v912, 1
      %v926 = vsel %vm584, %v925, %v924
      %v927 = vpack.c.b16 %v926, %v926
      %v928 = vrot.slane %v905, 1
      %v929 = vsel %vm566, %v906, %v928
      %v930 = vrot.slane %v907, 7
      %v931 = vsel %vm569, %v930, %v929
      %v932 = vrot.slane %v908, 6
      %v933 = vsel %vm572, %v932, %v931
      %v934 = vrot.slane %v909, 5
      %v935 = vsel %vm575, %v934, %v933
      %v936 = vrot.slane %v910, 4
      %v937 = vsel %vm578, %v936, %v935
      %v938 = vrot.slane %v911, 3
      %v939 = vsel %vm581, %v938, %v937
      %v940 = vrot.slane %v912, 2
      %v941 = vsel %vm584, %v940, %v939
      %v942 = vpack.c.b16 %v941, %v941
      %943 = vrot.lane.b32.xlu0 %v942, 8
      %v944 = vpop.permute.xlu0 %943
      %v953 = vunpack.c.l.b16 %v857
      %v954 = vunpack.c.l.b16 %v858
      %v955 = vunpack.c.l.b16 %v859
      %v956 = vunpack.c.l.b16 %v860
      %v957 = vunpack.c.l.b16 %v861
      %v958 = vunpack.c.l.b16 %v862
      %v959 = vunpack.c.l.b16 %v863
      %v960 = vunpack.c.l.b16 %v864
      %v961 = vpack.c.b16 %v953, %v953
      %v962 = vpack.c.b16 %v954, %v954
      %v963 = vpack.c.b16 %v955, %v955
      %v964 = vpack.c.b16 %v956, %v956
      %v965 = vpack.c.b16 %v957, %v957
      %v966 = vpack.c.b16 %v958, %v958
      %v967 = vpack.c.b16 %v959, %v959
      %v968 = vpack.c.b16 %v960, %v960
      %v969 = vunpack.c.l.b16 %v961
      %v970 = vunpack.c.l.b16 %v962
      %v971 = vunpack.c.l.b16 %v963
      %v972 = vunpack.c.l.b16 %v964
      %v973 = vunpack.c.l.b16 %v965
      %v974 = vunpack.c.l.b16 %v966
      %v975 = vunpack.c.l.b16 %v967
      %v976 = vunpack.c.l.b16 %v968
      %v977 = vrot.slane %v969, 2
      %v978 = vrot.slane %v970, 1
      %v979 = vsel %vm566, %v978, %v977
      %v980 = vsel %vm569, %v971, %v979
      %v981 = vrot.slane %v972, 7
      %v982 = vsel %vm572, %v981, %v980
      %v983 = vrot.slane %v973, 6
      %v984 = vsel %vm575, %v983, %v982
      %v985 = vrot.slane %v974, 5
      %v986 = vsel %vm578, %v985, %v984
      %v987 = vrot.slane %v975, 4
      %v988 = vsel %vm581, %v987, %v986
      %v989 = vrot.slane %v976, 3
      %v990 = vsel %vm584, %v989, %v988
      %v991 = vpack.c.b16 %v990, %v990
      %992 = vrot.lane.b32.xlu0 %v991, 16
      %v993 = vpop.permute.xlu0 %992
      %v994 = vrot.slane %v969, 3
      %v995 = vrot.slane %v970, 2
      %v996 = vsel %vm566, %v995, %v994
      %v997 = vrot.slane %v971, 1
      %v998 = vsel %vm569, %v997, %v996
      %v999 = vsel %vm572, %v972, %v998
      %v1000 = vrot.slane %v973, 7
      %v1001 = vsel %vm575, %v1000, %v999
      %v1002 = vrot.slane %v974, 6
      %v1003 = vsel %vm578, %v1002, %v1001
      %v1004 = vrot.slane %v975, 5
      %v1005 = vsel %vm581, %v1004, %v1003
      %v1006 = vrot.slane %v976, 4
      %v1007 = vsel %vm584, %v1006, %v1005
      %v1008 = vpack.c.b16 %v1007, %v1007
      %1009 = vrot.lane.b32.xlu0 %v1008, 24
      %v1010 = vpop.permute.xlu0 %1009
      %v1019 = vunpack.c.l.b16 %v865
      %v1020 = vunpack.c.l.b16 %v866
      %v1021 = vunpack.c.l.b16 %v867
      %v1022 = vunpack.c.l.b16 %v868
      %v1023 = vunpack.c.l.b16 %v869
      %v1024 = vunpack.c.l.b16 %v870
      %v1025 = vunpack.c.l.b16 %v871
      %v1026 = vunpack.c.l.b16 %v872
      %v1027 = vpack.c.b16 %v1019, %v1019
      %v1028 = vpack.c.b16 %v1020, %v1020
      %v1029 = vpack.c.b16 %v1021, %v1021
      %v1030 = vpack.c.b16 %v1022, %v1022
      %v1031 = vpack.c.b16 %v1023, %v1023
      %v1032 = vpack.c.b16 %v1024, %v1024
      %v1033 = vpack.c.b16 %v1025, %v1025
      %v1034 = vpack.c.b16 %v1026, %v1026
      %v1035 = vunpack.c.l.b16 %v1027
      %v1036 = vunpack.c.l.b16 %v1028
      %v1037 = vunpack.c.l.b16 %v1029
      %v1038 = vunpack.c.l.b16 %v1030
      %v1039 = vunpack.c.l.b16 %v1031
      %v1040 = vunpack.c.l.b16 %v1032
      %v1041 = vunpack.c.l.b16 %v1033
      %v1042 = vunpack.c.l.b16 %v1034
      %v1043 = vrot.slane %v1035, 4
      %v1044 = vrot.slane %v1036, 3
      %v1045 = vsel %vm566, %v1044, %v1043
      %v1046 = vrot.slane %v1037, 2
      %v1047 = vsel %vm569, %v1046, %v1045
      %v1048 = vrot.slane %v1038, 1
      %v1049 = vsel %vm572, %v1048, %v1047
      %v1050 = vsel %vm575, %v1039, %v1049
      %v1051 = vrot.slane %v1040, 7
      %v1052 = vsel %vm578, %v1051, %v1050
      %v1053 = vrot.slane %v1041, 6
      %v1054 = vsel %vm581, %v1053, %v1052
      %v1055 = vrot.slane %v1042, 5
      %v1056 = vsel %vm584, %v1055, %v1054
      %v1057 = vpack.c.b16 %v1056, %v1056
      %1058 = vrot.lane.b32.xlu0 %v1057, 32
      %v1059 = vpop.permute.xlu0 %1058
      %v1060 = vrot.slane %v1035, 5
      %v1061 = vrot.slane %v1036, 4
      %v1062 = vsel %vm566, %v1061, %v1060
      %v1063 = vrot.slane %v1037, 3
      %v1064 = vsel %vm569, %v1063, %v1062
      %v1065 = vrot.slane %v1038, 2
      %v1066 = vsel %vm572, %v1065, %v1064
      %v1067 = vrot.slane %v1039, 1
      %v1068 = vsel %vm575, %v1067, %v1066
      %v1069 = vsel %vm578, %v1040, %v1068
      %v1070 = vrot.slane %v1041, 7
      %v1071 = vsel %vm581, %v1070, %v1069
      %v1072 = vrot.slane %v1042, 6
      %v1073 = vsel %vm584, %v1072, %v1071
      %v1074 = vpack.c.b16 %v1073, %v1073
      %1075 = vrot.lane.b32.xlu0 %v1074, 40
      %v1076 = vpop.permute.xlu0 %1075
      %v1085 = vunpack.c.l.b16 %v873
      %v1086 = vunpack.c.l.b16 %v874
      %v1087 = vunpack.c.l.b16 %v875
      %v1088 = vunpack.c.l.b16 %v876
      %v1089 = vunpack.c.l.b16 %v877
      %v1090 = vunpack.c.l.b16 %v878
      %v1091 = vunpack.c.l.b16 %v879
      %v1092 = vunpack.c.l.b16 %v880
      %v1093 = vpack.c.b16 %v1085, %v1085
      %v1094 = vpack.c.b16 %v1086, %v1086
      %v1095 = vpack.c.b16 %v1087, %v1087
      %v1096 = vpack.c.b16 %v1088, %v1088
      %v1097 = vpack.c.b16 %v1089, %v1089
      %v1098 = vpack.c.b16 %v1090, %v1090
      %v1099 = vpack.c.b16 %v1091, %v1091
      %v1100 = vpack.c.b16 %v1092, %v1092
      %v1101 = vunpack.c.l.b16 %v1093
      %v1102 = vunpack.c.l.b16 %v1094
      %v1103 = vunpack.c.l.b16 %v1095
      %v1104 = vunpack.c.l.b16 %v1096
      %v1105 = vunpack.c.l.b16 %v1097
      %v1106 = vunpack.c.l.b16 %v1098
      %v1107 = vunpack.c.l.b16 %v1099
      %v1108 = vunpack.c.l.b16 %v1100
      %v1109 = vrot.slane %v1101, 6
      %v1110 = vrot.slane %v1102, 5
      %v1111 = vsel %vm566, %v1110, %v1109
      %v1112 = vrot.slane %v1103, 4
      %v1113 = vsel %vm569, %v1112, %v1111
      %v1114 = vrot.slane %v1104, 3
      %v1115 = vsel %vm572, %v1114, %v1113
      %v1116 = vrot.slane %v1105, 2
      %v1117 = vsel %vm575, %v1116, %v1115
      %v1118 = vrot.slane %v1106, 1
      %v1119 = vsel %vm578, %v1118, %v1117
      %v1120 = vsel %vm581, %v1107, %v1119
      %v1121 = vrot.slane %v1108, 7
      %v1122 = vsel %vm584, %v1121, %v1120
      %v1123 = vpack.c.b16 %v1122, %v1122
      %1124 = vrot.lane.b32.xlu0 %v1123, 48
      %v1125 = vpop.permute.xlu0 %1124
      %v1126 = vrot.slane %v1101, 7
      %v1127 = vrot.slane %v1102, 6
      %v1128 = vsel %vm566, %v1127, %v1126
      %v1129 = vrot.slane %v1103, 5
      %v1130 = vsel %vm569, %v1129, %v1128
      %v1131 = vrot.slane %v1104, 4
      %v1132 = vsel %vm572, %v1131, %v1130
      %v1133 = vrot.slane %v1105, 3
      %v1134 = vsel %vm575, %v1133, %v1132
      %v1135 = vrot.slane %v1106, 2
      %v1136 = vsel %vm578, %v1135, %v1134
      %v1137 = vrot.slane %v1107, 1
      %v1138 = vsel %vm581, %v1137, %v1136
      %v1139 = vsel %vm584, %v1108, %v1138
      %v1140 = vpack.c.b16 %v1139, %v1139
      %1141 = vrot.lane.b32.xlu0 %v1140, 56
      %v1142 = vpop.permute.xlu0 %1141
      %v1145 = vsel %vm745, %v927, %v944
      %v1147 = vsel %vm749, %v1145, %v993
      %v1149 = vsel %vm752, %v1147, %v1010
      %vm1150 = vcmask 261120
      %v1152 = vsel %vm1150, %v1149, %v1059
      %vm1153 = vcmask 326656
      %v1155 = vsel %vm1153, %v1152, %v1076
      %vm1156 = vcmask 392192
      %v1158 = vsel %vm1156, %v1155, %v1125
      %vm1159 = vcmask 457728
      %v1161 = vsel %vm1159, %v1158, %v1142
      %v1162 = vld [vmem:[%s7] sm:$0xf]
      %v1163 = vld [vmem:[%s8] sm:$0xff]
      %1165 = vset.pattern.permute.xlu0 0
      %1166 = vperm.xlu0 %1165, %v1163
      %v1167 = vpop.permute.xlu0 %1166
      %v1170 = vsel %vm745, %v1162, 0
      %v1172 = vsel %vm765, %v1161, 0
      %1174 = vmatpush.bf16.msra.mxu0 0
      %1175 = vmatpush.bf16.msra.mxu0 0
      %1176 = vmatpush.bf16.msra.mxu0 0
      %1177 = vmatpush.bf16.msra.mxu0 0
      %1178 = vmatpush.bf16.msra.mxu0 0
      %1179 = vmatpush.bf16.msra.mxu0 0
      %1180 = vmatpush.bf16.msra.mxu0 0
      %1181 = vmatpush.bf16.msra.mxu0 %v1172
      %1182 = vmatmul.bf16.gmra.mxu0 %v1170
      %v1183 = vpop.f32.mrf.mxu0
      %v1184 = vadd.f32 %v1167, %v1183
      %v1185 = vpop.f32.mrf.mxu0
      %1186 = vdwg.mxu0
      %v1187 = vmax.f32 %v1184, 0.0
      %v1188 = vld [vmem:[%s9] sm:$0xf]
      %v1189 = vld [vmem:[%s9 + $0x4] sm:$0xf]
      %v1190 = vld [vmem:[%s10] sm:$0xff]
      %v1191 = vld [vmem:[%s10 + $0x8] sm:$0xff]
      %v1192 = vpack.c.bf16 %v1187, %v1187
      %1194 = vset.pattern.permute.xlu0 0
      %1195 = vperm.xlu0 %1194, %v1190
      %v1196 = vpop.permute.xlu0 %1195
      %1199 = vset.pattern.permute.xlu0 0
      %1200 = vperm.xlu0 %1199, %v1191
      %v1201 = vpop.permute.xlu0 %1200
      %v1205 = vunpack.c.l.b16 %v1188
      %v1206 = vunpack.c.l.b16 %v1189
      %v1207 = vpack.c.b16 %v1206, %v1205
      %v1209 = vsel %vm745, %v1207, 0
      %v1212 = vsel %vm765, %v1192, 0
      %1214 = vmatpush.bf16.msra.mxu0 0
      %1215 = vmatpush.bf16.msra.mxu0 0
      %1216 = vmatpush.bf16.msra.mxu0 0
      %1217 = vmatpush.bf16.msra.mxu0 0
      %1218 = vmatpush.bf16.msra.mxu0 0
      %1219 = vmatpush.bf16.msra.mxu0 0
      %1220 = vmatpush.bf16.msra.mxu0 0
      %1221 = vmatpush.bf16.msra.mxu0 %v1212
      %1222 = vmatmul.bf16.gmra.mxu0 %v1209
      %v1223 = vpop.f32.mrf.mxu0
      %v1224 = vadd.f32 %v1196, %v1223
      %v1225 = vpop.f32.mrf.mxu0
      %v1226 = vadd.f32 %v1201, %v1225
      %1227 = vdwg.mxu0
      %v1228 = vmax.f32 %v1224, 0.0
      %v1229 = vmax.f32 %v1226, 0.0
      %1232 = vrot.lane.b32.xlu0 %v1228, 120
      %v1233 = vpop.permute.xlu0 %1232
      %1234 = vrot.lane.b32.xlu0 %v1229, 120
      %v1235 = vpop.permute.xlu0 %1234
      %v1238 = vmax.f32 %v1228, %v1233
      %v1239 = vmax.f32 %v1229, %v1235
      %1242 = vrot.lane.b32.xlu0 %v1238, 112
      %v1243 = vpop.permute.xlu0 %1242
      %1244 = vrot.lane.b32.xlu0 %v1239, 112
      %v1245 = vpop.permute.xlu0 %1244
      %v1248 = vmax.f32 %v1238, %v1243
      %v1249 = vmax.f32 %v1239, %v1245
      %1252 = vrot.lane.b32.xlu0 %v1248, 96
      %v1253 = vpop.permute.xlu0 %1252
      %1254 = vrot.lane.b32.xlu0 %v1249, 96
      %v1255 = vpop.permute.xlu0 %1254
      %v1258 = vmax.f32 %v1248, %v1253
      %v1259 = vmax.f32 %v1249, %v1255
      %v1260 = vld [vmem:[%s11] sm:$0xf]
      %v1261 = vld [vmem:[%s11 + $0x4] sm:$0xf]
      %v1262 = vld [vmem:[%s11 + $0x8] sm:$0xf]
      %v1263 = vld [vmem:[%s11 + $0xc] sm:$0xf]
      %v1264 = vpack.c.bf16 %v1259, %v1258
      %v1269 = vunpack.c.l.b16 %v1260
      %v1270 = vunpack.c.l.b16 %v1261
      %v1271 = vunpack.c.l.b16 %v1262
      %v1272 = vunpack.c.l.b16 %v1263
      %v1273 = vpack.c.b16 %v1270, %v1269
      %v1274 = vpack.c.b16 %v1272, %v1271
      %v1276 = vsel %vm749, %v1273, 0
      %v1279 = vsel %vm749, %v1274, 0
      %1281 = vmatpush.bf16.msra.mxu0 0
      %1282 = vmatpush.bf16.msra.mxu0 0
      %1283 = vmatpush.bf16.msra.mxu0 0
      %1284 = vmatpush.bf16.msra.mxu0 0
      %1285 = vmatpush.bf16.msra.mxu0 0
      %1286 = vmatpush.bf16.msra.mxu0 0
      %1287 = vmatpush.bf16.msra.mxu0 0
      %1288 = vmatpush.bf16.msra.mxu0 %v1264
      %1289 = vmatmul.bf16.gmra.mxu0 %v1276
      %v1290 = vpop.f32.mrf.mxu0
      %v1291 = vadd.f32 0.0, %v1290
      %v1292 = vpop.f32.mrf.mxu0
      %v1293 = vadd.f32 0.0, %v1292
      %1294 = vmatmul.bf16.gmra.mxu0 %v1279
      %v1295 = vpop.f32.mrf.mxu0
      %v1296 = vadd.f32 0.0, %v1295
      %v1297 = vpop.f32.mrf.mxu0
      %v1298 = vadd.f32 0.0, %v1297
      %1299 = vdwg.mxu0
      %v1304 = vunpack.c.l.b16 %v844
      %v1305 = vunpack.c.l.b16 %v845
      %v1306 = vunpack.c.l.b16 %v846
      %v1307 = vunpack.c.l.b16 %v847
      %v1308 = vpack.c.b16 %v1305, %v1304
      %v1309 = vpack.c.b16 %v1307, %v1306
      %v1311 = vsel %vm749, %v1308, 0
      %v1314 = vsel %vm749, %v1309, 0
      %1316 = vmatpush.bf16.msra.mxu0 0
      %1317 = vmatpush.bf16.msra.mxu0 0
      %1318 = vmatpush.bf16.msra.mxu0 0
      %1319 = vmatpush.bf16.msra.mxu0 0
      %1320 = vmatpush.bf16.msra.mxu0 0
      %1321 = vmatpush.bf16.msra.mxu0 0
      %1322 = vmatpush.bf16.msra.mxu0 0
      %1323 = vmatpush.bf16.msra.mxu0 %v848
      %1324 = vmatmul.bf16.gmra.mxu0 %v1311
      %v1325 = vpop.f32.mrf.mxu0
      %v1326 = vadd.f32 %v1291, %v1325
      %v1327 = vpop.f32.mrf.mxu0
      %v1328 = vadd.f32 %v1293, %v1327
      %1329 = vmatmul.bf16.gmra.mxu0 %v1314
      %v1330 = vpop.f32.mrf.mxu0
      %v1331 = vadd.f32 %v1296, %v1330
      %v1332 = vpop.f32.mrf.mxu0
      %v1333 = vadd.f32 %v1298, %v1332
      %1334 = vdwg.mxu0
      %1336 = vset.pattern.permute.xlu0 0
      %1337 = vperm.xlu0 %1336, %v504
      %v1338 = vpop.permute.xlu0 %1337
      %1341 = vset.pattern.permute.xlu0 0
      %1342 = vperm.xlu0 %1341, %v505
      %v1343 = vpop.permute.xlu0 %1342
      %1346 = vset.pattern.permute.xlu0 0
      %1347 = vperm.xlu0 %1346, %v506
      %v1348 = vpop.permute.xlu0 %1347
      %1351 = vset.pattern.permute.xlu0 0
      %1352 = vperm.xlu0 %1351, %v507
      %v1353 = vpop.permute.xlu0 %1352
      %v1355 = vadd.f32 %v1326, %v1338
      %v1356 = vadd.f32 %v1328, %v1343
      %v1357 = vadd.f32 %v1331, %v1348
      %v1358 = vadd.f32 %v1333, %v1353
      %v1359 = vmax.f32 %v1355, 0.0
      %v1360 = vmax.f32 %v1356, 0.0
      %v1361 = vmax.f32 %v1357, 0.0
      %v1362 = vmax.f32 %v1358, 0.0
      %v1363 = vpack.c.bf16 %v1359, %v1359
      %v1364 = vpack.c.bf16 %v1360, %v1360
      %v1365 = vpack.c.bf16 %v1361, %v1361
      %v1366 = vpack.c.bf16 %v1362, %v1362
      %vm1367 = vcmask 60416
      %1368 = vst.msk [vmem:[%s502] sm:$0xf] %vm1367, %v1363
      %1369 = vst.msk [vmem:[%s502 + $0x4] sm:$0xf] %vm1367, %v1364
      %1370 = vst.msk [vmem:[%s502 + $0x8] sm:$0xf] %vm1367, %v1365
      %1371 = vst.msk [vmem:[%s502 + $0xc] sm:$0xf] %vm1367, %v1366
      %p1372 = scmp.lt.s32.totalorder %s28, 1
      %s1373 = scalar_select %p1372, %s28, 1
      %p1374 = scmp.lt.s32.totalorder %s29, 0
      %s1375 = scalar_select %p1374, %s29, 0
      %s1376 = smul.addr %s1373, 4
      %s1377 = sadd.s32 %s1375, %s1376
      %s1378 = smul.addr %s1377, 4
      %s1379 = scalar_lea.vmem %s13, %s1378
      // Predicated region
      $region73: #{tpu_custom_call.1} parent=71 // pred_check
        %p1380 = pneg %p343
      $region74: #{tpu_custom_call.1} parent=71 // pred_check_branch
        %1382 = sbr.rel (%p1380) target = $region76
      $region75: #{tpu_custom_call.1} parent=71 // pred_region
        _
      $region76: #{tpu_custom_call.1} parent=71 // pred_fallthru
        _
    $region72: #{tpu_custom_call.1} parent=5 // pred_fallthru
      _
    %p1383 = scmp.le.s32.totalorder 2, %s19
    // Predicated region
    $region77: #{tpu_custom_call.1} parent=5 // pred_check
      %p1384 = pneg %p1383
    $region78: #{tpu_custom_call.1} parent=5 // pred_check_branch
      %1386 = sbr.rel (%p1384) target = $region80
    $region79: #{tpu_custom_call.1} parent=5 // pred_region
      %s1387 = ssub.s32 %s19, 2
      // Predicated region
      $region81: #{tpu_custom_call.1} parent=79 // pred_check
        %p1388 = pneg %p349
      $region82: #{tpu_custom_call.1} parent=79 // pred_check_branch
        %1390 = sbr.rel (%p1388) target = $region84
      $region83: #{tpu_custom_call.1} parent=79 // pred_region
        %p1391 = scmp.lt.s32.totalorder %s30, 1
        %s1392 = scalar_select %p1391, %s30, 1
        %p1393 = scmp.lt.s32.totalorder %s31, 0
        %s1394 = scalar_select %p1393, %s31, 0
        %s1395 = smul.addr %s1392, 4
        %s1396 = sadd.s32 %s1394, %s1395
        %s1397 = smul.addr %s1396, 4
        %s1398 = scalar_lea.vmem %s13, %s1397
      $region84: #{tpu_custom_call.1} parent=79 // pred_fallthru
        _
    $region80: #{tpu_custom_call.1} parent=5 // pred_fallthru
      _
  $region6: #{tpu_custom_call.1} parent=0 // loop_footer
    %s23 = sadd.s32 1, %s19
  $region7: #{tpu_custom_call.1} parent=0 // loop_footer_branch
    %18 = sbr.rel target = $region3
  $region8: #{tpu_custom_call.1} parent=0 // loop_exit
    _

</llo_original>
